<compile_context>
chip_gen: v7x
topology: tpu7x:2x2x1
jax: 0.10.0
libtpu: 0.0.40
codegen_flags: <defaults>
</compile_context>

<pallas_src>
import functools

import jax
import jax.numpy as jnp
from jax.experimental import pallas as pl
from jax.experimental.pallas import tpu as pltpu

LANE = 128


def _round_up(n, m):
    return ((n + m - 1) // m) * m


# ------------------------------ fused kernel ------------------------------- #

def _fused_encoder_kernel(x_ref, cw_ref, cb_ref,
                          wqkv_ref, bqkv_ref, wo_ref, bo_ref,
                          g1_ref, be1_ref, w1_ref, bb1_ref,
                          w2_ref, bb2_ref, g2_ref, be2_ref,
                          o_ref, act_ref, *, d_real, eps):
    """Fused conv1x1 + full post-norm TransformerEncoder stack.

    Grid = (batch_tiles, n_layers), layer axis innermost ("arbitrary").
    x_ref:   (Bt, S, Cin) f32   — raw conv input (constant across the layer axis)
    weights: (1, ...) blocks of layer-stacked arrays, bf16 (biases/LN f32)
    o_ref:   (S, Bt, Dp) f32    — written only at the last layer (permute folded)
    act_ref: (Bt*S, Dp) f32 VMEM scratch — activation resident across layers
    """
    f32, bf16 = jnp.float32, jnp.bfloat16
    layer = pl.program_id(1)
    last_layer = pl.num_programs(1) - 1
    Bt, S, Cin = x_ref.shape
    M, Dp = act_ref.shape                       # M = Bt * S
    inv_d = 1.0 / d_real

    # ---- layer 0 only: conv1x1 projection into the resident activation ----
    @pl.when(layer == 0)
    def _conv():
        xr = x_ref[...].reshape(M, Cin).astype(bf16)
        act_ref[...] = (jnp.dot(xr, cw_ref[...], preferred_element_type=f32)
                        + cb_ref[...])

    def layer_norm(y, g, b):
        # Padded lanes of y are exactly 0 and gamma/beta are zero-padded, so
        # sums over Dp equal sums over the real d_model channels and padded
        # lanes of the result stay 0 (LayerNorm over the real channels only).
        mu = jnp.sum(y, axis=-1, keepdims=True) * inv_d
        var = jnp.sum(y * y, axis=-1, keepdims=True) * inv_d - mu * mu
        var = jnp.maximum(var, 0.0)
        return (y - mu) * jax.lax.rsqrt(var + eps) * g + b

    x = act_ref[...]                            # (M, Dp) f32, resident in VMEM
    xb = x.astype(bf16)

    # ---- fused QKV projection (1/sqrt(d_model) pre-folded into Wq, bq) ----
    qkv = jnp.dot(xb, wqkv_ref[0], preferred_element_type=f32) + bqkv_ref[0]
    q = qkv[:, :Dp].reshape(Bt, S, Dp).astype(bf16)        # lane-aligned slices
    k = qkv[:, Dp:2 * Dp].reshape(Bt, S, Dp).astype(bf16)
    v = qkv[:, 2 * Dp:].reshape(Bt, S, Dp).astype(bf16)

    # ---- single-head attention, batched over Bt ----
    # TODO(synk): flash-tile (online softmax over K/V tiles) for large S on v7x.
    s = jnp.einsum('bqd,bkd->bqk', q, k, preferred_element_type=f32)   # (Bt,S,S)
    m = jnp.max(s, axis=-1, keepdims=True)
    e = jnp.exp(s - m)
    p = e * pl.reciprocal(jnp.sum(e, axis=-1, keepdims=True), approx=True)
    attn = jnp.einsum('bqk,bkd->bqd', p.astype(bf16), v,
                      preferred_element_type=f32).reshape(M, Dp)

    attn_out = jnp.dot(attn.astype(bf16), wo_ref[0],
                       preferred_element_type=f32) + bo_ref[0]

    # ---- residual + LayerNorm 1 ----
    x1 = layer_norm(x + attn_out, g1_ref[0], be1_ref[0])

    # ---- feed-forward: lin1 + relu + lin2 ----
    # TODO(synk): row-tile the FFN for large S on v7x so (M, FFp) f32 never
    #             lives whole in VMEM.
    h = jnp.dot(x1.astype(bf16), w1_ref[0], preferred_element_type=f32) + bb1_ref[0]
    h = jnp.maximum(h, 0.0)
    ff = jnp.dot(h.astype(bf16), w2_ref[0], preferred_element_type=f32) + bb2_ref[0]

    # ---- residual + LayerNorm 2 ----
    x2 = layer_norm(x1 + ff, g2_ref[0], be2_ref[0])
    act_ref[...] = x2                           # stays in VMEM for the next layer

    # ---- last layer: write output directly in (S, B, Dp) layout ----
    @pl.when(layer == last_layer)
    def _writeback():
        y = x2.reshape(Bt, S, Dp)
        for b in range(Bt):                     # static unroll (small Bt);
            o_ref[:, b, :] = y[b]               # folds the (B,S,D)->(S,B,D) permute


# ------------------------------ forward pass ------------------------------- #

def trans_encoder_forward(x, kp, *, d_model, eps=1e-5):
    """TransEncoder.forward:  x (B, Cin, L)  ->  (L, B, d_model)."""
    B, Cin, L = x.shape
    S = L
    NL, Dp, _ = kp["wqkv"].shape
    FFp = kp["w1"].shape[2]

    # Only wrapper-side layout op: transpose of the raw conv input (the conv
    # projection itself runs inside the fused kernel at layer index 0).
    x_t = jnp.transpose(x, (0, 2, 1))           # (B, S, Cin)

    Bt = B                                      # whole batch per grid step -> M = B*S matmul rows
    M = Bt * S
    assert B % Bt == 0

    layer_arrays = [kp["wqkv"], kp["bqkv"], kp["wo"], kp["bo"],
                    kp["ln1_g"], kp["ln1_b"], kp["w1"], kp["b1"],
                    kp["w2"], kp["b2"], kp["ln2_g"], kp["ln2_b"]]

    def layer_spec(a):                          # per-layer block, indexed by layer axis
        tail = a.ndim - 1
        return pl.BlockSpec((1,) + a.shape[1:],
                            lambda bt, l, _t=tail: (l,) + (0,) * _t)

    def const_spec(a):                          # whole array, constant index
        nd = a.ndim
        return pl.BlockSpec(a.shape, lambda bt, l, _n=nd: (0,) * _n)

    in_specs = ([pl.BlockSpec((Bt, S, Cin), lambda bt, l: (bt, 0, 0)),
                 const_spec(kp["conv_wt"]), const_spec(kp["conv_b"])]
                + [layer_spec(a) for a in layer_arrays])
    out_spec = pl.BlockSpec((S, Bt, Dp), lambda bt, l: (0, bt, 0))

    # Explicit scoped-VMEM budget from the real footprint (~2x headroom),
    # clamped to [32 MiB, 64 MiB] so it is valid on v5e/v6e/v7x.
    def _nb(a):
        return int(a.size) * a.dtype.itemsize
    per_layer_block = sum(_nb(a) // NL for a in layer_arrays)
    const_blocks = Bt * S * Cin * 4 + _nb(kp["conv_wt"]) + _nb(kp["conv_b"]) + S * Bt * Dp * 4
    intermediates = M * 3 * Dp * 4 + M * FFp * 4 + 6 * M * Dp * 4 + 2 * Bt * S * S * 4
    vmem_limit = int(min(64 * 2 ** 20,
                         max(32 * 2 ** 20,
                             2 * (2 * per_layer_block + 2 * const_blocks
                                  + M * Dp * 4 + intermediates))))

    out_padded = pl.pallas_call(
        functools.partial(_fused_encoder_kernel, d_real=d_model, eps=eps),
        out_shape=jax.ShapeDtypeStruct((S, B, Dp), jnp.float32),
        grid=(B // Bt, NL),
        in_specs=in_specs,
        out_specs=out_spec,
        scratch_shapes=[pltpu.VMEM((M, Dp), jnp.float32)],
        compiler_params=pltpu.CompilerParams(
            dimension_semantics=("parallel", "arbitrary"),
            vmem_limit_bytes=vmem_limit),
    )(x_t, kp["conv_wt"], kp["conv_b"], *layer_arrays)

    return out_padded[:, :, :d_model]           # (L, B, d_model); drop lane padding


# ------------------------- parameter init & packing ------------------------ #

def init_params(key, inc, d_model, dim_ff, nlayer):
    """Raw parameters in PyTorch conventions (Linear weight = (out, in))."""
    def nrm(k, shape, scale=0.05):
        return scale * jax.random.normal(k, shape, dtype=jnp.float32)

    keys = jax.random.split(key, 1 + nlayer)
    kc = jax.random.split(keys[0], 2)
    params = {
        "conv_w": nrm(kc[0], (d_model, inc)),
        "conv_b": nrm(kc[1], (d_model,)),
        "layers": [],
    }
    for li in range(nlayer):
        k = jax.random.split(keys[1 + li], 8)
        params["layers"].append({
            "in_proj_w": nrm(k[0], (3 * d_model, d_model)),
            "in_proj_b": nrm(k[1], (3 * d_model,)),
            "out_proj_w": nrm(k[2], (d_model, d_model)),
            "out_proj_b": nrm(k[3], (d_model,)),
            "lin1_w": nrm(k[4], (dim_ff, d_model)),
            "lin1_b": nrm(k[5], (dim_ff,)),
            "lin2_w": nrm(k[6], (d_model, dim_ff)),
            "lin2_b": nrm(k[7], (d_model,)),
            "norm1_g": jnp.ones((d_model,), jnp.float32),
            "norm1_b": jnp.zeros((d_model,), jnp.float32),
            "norm2_g": jnp.ones((d_model,), jnp.float32),
            "norm2_b": jnp.zeros((d_model,), jnp.float32),
        })
    return params


def prepare_params(raw, d_model):
    """One-time packing: transpose, fold attention scale into Wq/bq, zero-pad
    d_model/dim_ff to lane-dense multiples of 128, cast matmul weights to
    bf16, and stack per-layer tensors with a leading layer dimension."""
    f32, bf16 = jnp.float32, jnp.bfloat16
    D = d_model
    FF = int(raw["layers"][0]["lin1_w"].shape[0])
    Dp = _round_up(D, LANE)
    FFp = _round_up(FF, LANE)
    scale = 1.0 / (D ** 0.5)          # nhead=1 -> head_dim == d_model

    def pad2(w, rows, cols):          # (r0, c0) -> (rows, cols) zero-padded
        return jnp.zeros((rows, cols), f32).at[:w.shape[0], :w.shape[1]].set(w)

    def padrow(v, cols):              # (n,) -> (1, cols) zero-padded
        return jnp.zeros((1, cols), f32).at[0, :v.shape[0]].set(v)

    conv_w = jnp.asarray(raw["conv_w"], f32)                 # (D, Cin)
    cin = conv_w.shape[1]
    kp = {
        "conv_wt": pad2(conv_w.T, cin, Dp).astype(bf16),     # (Cin, Dp)
        "conv_b": padrow(jnp.asarray(raw["conv_b"], f32), Dp),
    }

    per_layer = {name: [] for name in
                 ("wqkv", "bqkv", "wo", "bo", "ln1_g", "ln1_b",
                  "w1", "b1", "w2", "b2", "ln2_g", "ln2_b")}
    for p in raw["layers"]:
        ipw = jnp.asarray(p["in_proj_w"], f32)               # (3D, D)
        ipb = jnp.asarray(p["in_proj_b"], f32)               # (3D,)
        wq, wk, wv = ipw[:D] * scale, ipw[D:2 * D], ipw[2 * D:]
        bq, bk, bv = ipb[:D] * scale, ipb[D:2 * D], ipb[2 * D:]
        per_layer["wqkv"].append(jnp.concatenate(
            [pad2(wq.T, Dp, Dp), pad2(wk.T, Dp, Dp), pad2(wv.T, Dp, Dp)],
            axis=1).astype(bf16))                            # (Dp, 3Dp)
        per_layer["bqkv"].append(jnp.concatenate(
            [padrow(bq, Dp), padrow(bk, Dp), padrow(bv, Dp)], axis=1))
        per_layer["wo"].append(pad2(jnp.asarray(p["out_proj_w"], f32).T, Dp, Dp).astype(bf16))
        per_layer["bo"].append(padrow(jnp.asarray(p["out_proj_b"], f32), Dp))
        per_layer["ln1_g"].append(padrow(jnp.asarray(p["norm1_g"], f32), Dp))
        per_layer["ln1_b"].append(padrow(jnp.asarray(p["norm1_b"], f32), Dp))
        per_layer["w1"].append(pad2(jnp.asarray(p["lin1_w"], f32).T, Dp, FFp).astype(bf16))
        per_layer["b1"].append(padrow(jnp.asarray(p["lin1_b"], f32), FFp))
        per_layer["w2"].append(pad2(jnp.asarray(p["lin2_w"], f32).T, FFp, Dp).astype(bf16))
        per_layer["b2"].append(padrow(jnp.asarray(p["lin2_b"], f32), Dp))
        per_layer["ln2_g"].append(padrow(jnp.asarray(p["norm2_g"], f32), Dp))
        per_layer["ln2_b"].append(padrow(jnp.asarray(p["norm2_b"], f32), Dp))

    for name, arrs in per_layer.items():
        kp[name] = jnp.stack(arrs, axis=0)      # leading layer dim, indexed by the layer grid axis
    return kp


# ---------------------------------- main ----------------------------------- #

if __name__ == "__main__":
    B, INC, OUTC, L, NLAYER = 2, 16, 32, 8, 4   # small, forward-consistent dims

    root = jax.random.PRNGKey(0)
    kx, kw = jax.random.split(root)
    x = jax.random.normal(kx, (B, INC, L), dtype=jnp.float32)   # NCL, like Conv1d

    raw_params = init_params(kw, INC, OUTC, OUTC, NLAYER)
    kparams = prepare_params(raw_params, OUTC)

    forward = jax.jit(functools.partial(trans_encoder_forward, d_model=OUTC))
    out = jax.block_until_ready(forward(x, kparams))            # (L, B, d_model)

    assert out.shape == (L, B, OUTC), out.shape
    assert bool(jnp.all(jnp.isfinite(out)))
    print("KERNEL_OK")
</pallas_src>

<mosaic_0001>
module attributes {stable_mosaic.version = 11 : i64} {
  func.func @_fused_encoder_kernel(%arg0: i32, %arg1: i32, %arg2: memref<2x8x16xf32, #tpu.memory_space<vmem>>, %arg3: memref<16x128xbf16, #tpu.memory_space<vmem>>, %arg4: memref<1x128xf32, #tpu.memory_space<vmem>>, %arg5: memref<1x128x384xbf16, #tpu.memory_space<vmem>>, %arg6: memref<1x1x384xf32, #tpu.memory_space<vmem>>, %arg7: memref<1x128x128xbf16, #tpu.memory_space<vmem>>, %arg8: memref<1x1x128xf32, #tpu.memory_space<vmem>>, %arg9: memref<1x1x128xf32, #tpu.memory_space<vmem>>, %arg10: memref<1x1x128xf32, #tpu.memory_space<vmem>>, %arg11: memref<1x128x128xbf16, #tpu.memory_space<vmem>>, %arg12: memref<1x1x128xf32, #tpu.memory_space<vmem>>, %arg13: memref<1x128x128xbf16, #tpu.memory_space<vmem>>, %arg14: memref<1x1x128xf32, #tpu.memory_space<vmem>>, %arg15: memref<1x1x128xf32, #tpu.memory_space<vmem>>, %arg16: memref<1x1x128xf32, #tpu.memory_space<vmem>>, %arg17: memref<8x2x128xf32, #tpu.memory_space<vmem>>, %arg18: memref<16x128xf32, #tpu.memory_space<vmem>>) attributes {dimension_semantics = [#tpu.dimension_semantics<parallel>, #tpu.dimension_semantics<arbitrary>], iteration_bounds = array<i64: 1, 4>, scalar_prefetch = 0 : i64, scratch_operands = 1 : i64, tpu.core_type = #tpu.core_type<tc>, window_params = [{transform_indices = @transform_0, window_bounds = array<i64: 2, 8, 16>}, {pipeline_mode = #tpu.pipeline_mode<synchronous>, transform_indices = @transform_1, window_bounds = array<i64: 16, 128>}, {pipeline_mode = #tpu.pipeline_mode<synchronous>, transform_indices = @transform_2, window_bounds = array<i64: 1, 128>}, {transform_indices = @transform_3, window_bounds = array<i64: 1, 128, 384>}, {transform_indices = @transform_4, window_bounds = array<i64: 1, 1, 384>}, {transform_indices = @transform_5, window_bounds = array<i64: 1, 128, 128>}, {transform_indices = @transform_6, window_bounds = array<i64: 1, 1, 128>}, {transform_indices = @transform_7, window_bounds = array<i64: 1, 1, 128>}, {transform_indices = @transform_8, window_bounds = array<i64: 1, 1, 128>}, {transform_indices = @transform_9, window_bounds = array<i64: 1, 128, 128>}, {transform_indices = @transform_10, window_bounds = array<i64: 1, 1, 128>}, {transform_indices = @transform_11, window_bounds = array<i64: 1, 128, 128>}, {transform_indices = @transform_12, window_bounds = array<i64: 1, 1, 128>}, {transform_indices = @transform_13, window_bounds = array<i64: 1, 1, 128>}, {transform_indices = @transform_14, window_bounds = array<i64: 1, 1, 128>}, {transform_indices = @transform_15, window_bounds = array<i64: 8, 2, 128>}]} {
    %c0_i32 = arith.constant 0 : i32
    %0 = arith.cmpi eq, %arg1, %c0_i32 : i32
    %1 = arith.extui %0 : i1 to i32
    %c0_i32_0 = arith.constant 0 : i32
    %2 = arith.cmpi ne, %1, %c0_i32_0 : i32
    scf.if %2 {
      %c0_61 = arith.constant 0 : index
      %c0_62 = arith.constant 0 : index
      %c0_63 = arith.constant 0 : index
      %123 = vector.load %arg2[%c0_61, %c0_62, %c0_63] : memref<2x8x16xf32, #tpu.memory_space<vmem>>, vector<2x8x16xf32>
      %124 = vector.shape_cast %123 : vector<2x8x16xf32> to vector<16x16xf32>
      %125 = arith.truncf %124 : vector<16x16xf32> to vector<16x16xbf16>
      %c0_64 = arith.constant 0 : index
      %c0_65 = arith.constant 0 : index
      %126 = vector.load %arg3[%c0_64, %c0_65] : memref<16x128xbf16, #tpu.memory_space<vmem>>, vector<16x128xbf16>
      %cst_66 = arith.constant dense<0.000000e+00> : vector<16x128xf32>
      %127 = tpu.matmul %125, %126, %cst_66 {dimension_numbers = #tpu.dot_dimension_numbers<[1], [0], [0], [1], [0, 0, 1, 1], [], []>} : vector<16x16xbf16>, vector<16x128xbf16>, vector<16x128xf32> -> vector<16x128xf32>
      %c0_67 = arith.constant 0 : index
      %c0_68 = arith.constant 0 : index
      %128 = vector.load %arg4[%c0_67, %c0_68] : memref<1x128xf32, #tpu.memory_space<vmem>>, vector<1x128xf32>
      %129 = vector.broadcast %128 : vector<1x128xf32> to vector<16x128xf32>
      %130 = arith.addf %127, %129 : vector<16x128xf32>
      %c0_69 = arith.constant 0 : index
      %c0_70 = arith.constant 0 : index
      %131 = vector.load %arg18[%c0_69, %c0_70] : memref<16x128xf32, #tpu.memory_space<vmem>>, vector<16x128xf32>
      tpu.vector_store %arg18[%c0_69, %c0_70], %130 {strides = array<i32>} : memref<16x128xf32, #tpu.memory_space<vmem>>, vector<16x128xf32>,
    } else {
    }
    %c0 = arith.constant 0 : index
    %c0_1 = arith.constant 0 : index
    %3 = vector.load %arg18[%c0, %c0_1] : memref<16x128xf32, #tpu.memory_space<vmem>>, vector<16x128xf32>
    %4 = arith.truncf %3 : vector<16x128xf32> to vector<16x128xbf16>
    %c0_2 = arith.constant 0 : index
    %c0_3 = arith.constant 0 : index
    %c0_4 = arith.constant 0 : index
    %5 = vector.load %arg5[%c0_2, %c0_3, %c0_4] : memref<1x128x384xbf16, #tpu.memory_space<vmem>>, vector<1x128x384xbf16>
    %6 = vector.shape_cast %5 : vector<1x128x384xbf16> to vector<128x384xbf16>
    %cst = arith.constant dense<0.000000e+00> : vector<16x384xf32>
    %7 = tpu.matmul %4, %6, %cst {dimension_numbers = #tpu.dot_dimension_numbers<[1], [0], [0], [1], [0, 0, 1, 1], [], []>} : vector<16x128xbf16>, vector<128x384xbf16>, vector<16x384xf32> -> vector<16x384xf32>
    %c0_5 = arith.constant 0 : index
    %c0_6 = arith.constant 0 : index
    %c0_7 = arith.constant 0 : index
    %8 = vector.load %arg6[%c0_5, %c0_6, %c0_7] : memref<1x1x384xf32, #tpu.memory_space<vmem>>, vector<1x1x384xf32>
    %9 = vector.shape_cast %8 : vector<1x1x384xf32> to vector<1x384xf32>
    %10 = vector.broadcast %9 : vector<1x384xf32> to vector<16x384xf32>
    %11 = arith.addf %7, %10 : vector<16x384xf32>
    %12 = vector.extract_strided_slice %11 {offsets = [0, 0], sizes = [16, 128], strides = [1, 1]} : vector<16x384xf32> to vector<16x128xf32>
    %13 = vector.shape_cast %12 : vector<16x128xf32> to vector<2x8x128xf32>
    %14 = arith.truncf %13 : vector<2x8x128xf32> to vector<2x8x128xbf16>
    %15 = vector.extract_strided_slice %11 {offsets = [0, 128], sizes = [16, 128], strides = [1, 1]} : vector<16x384xf32> to vector<16x128xf32>
    %16 = vector.shape_cast %15 : vector<16x128xf32> to vector<2x8x128xf32>
    %17 = arith.truncf %16 : vector<2x8x128xf32> to vector<2x8x128xbf16>
    %18 = vector.extract_strided_slice %11 {offsets = [0, 256], sizes = [16, 128], strides = [1, 1]} : vector<16x384xf32> to vector<16x128xf32>
    %19 = vector.shape_cast %18 : vector<16x128xf32> to vector<2x8x128xf32>
    %20 = arith.truncf %19 : vector<2x8x128xf32> to vector<2x8x128xbf16>
    "tpu.trace_start"() <{level = 10 : i32, message = "bqd,bkd->bqk"}> : () -> ()
    %cst_8 = arith.constant dense<0.000000e+00> : vector<2x8x8xf32>
    %21 = tpu.matmul %14, %17, %cst_8 {dimension_numbers = #tpu.dot_dimension_numbers<[2], [2], [1], [1], [0, 0, 0, 1, 1, 1], [0], [0]>} : vector<2x8x128xbf16>, vector<2x8x128xbf16>, vector<2x8x8xf32> -> vector<2x8x8xf32>
    "tpu.trace_stop"() : () -> ()
    %cst_9 = arith.constant dense<0xFF800000> : vector<2x8xf32>
    %22 = vector.multi_reduction <maximumf>, %21, %cst_9 [2] : vector<2x8x8xf32> to vector<2x8xf32>
    %23 = vector.shape_cast %22 : vector<2x8xf32> to vector<2x8x1xf32>
    %24 = vector.broadcast %23 : vector<2x8x1xf32> to vector<2x8x8xf32>
    %25 = arith.subf %21, %24 : vector<2x8x8xf32>
    %26 = math.exp %25 : vector<2x8x8xf32>
    %cst_10 = arith.constant dense<0.000000e+00> : vector<2x8xf32>
    %27 = vector.multi_reduction <add>, %26, %cst_10 [2] : vector<2x8x8xf32> to vector<2x8xf32>
    %28 = vector.shape_cast %27 : vector<2x8xf32> to vector<2x8x1xf32>
    %29 = tpu.reciprocal %28 {approx = true} : vector<2x8x1xf32> -> vector<2x8x1xf32>
    %30 = vector.broadcast %29 : vector<2x8x1xf32> to vector<2x8x8xf32>
    %31 = arith.mulf %26, %30 : vector<2x8x8xf32>
    %32 = arith.truncf %31 : vector<2x8x8xf32> to vector<2x8x8xbf16>
    "tpu.trace_start"() <{level = 10 : i32, message = "bqk,bkd->bqd"}> : () -> ()
    %cst_11 = arith.constant dense<0.000000e+00> : vector<2x8x128xf32>
    %33 = tpu.matmul %32, %20, %cst_11 {dimension_numbers = #tpu.dot_dimension_numbers<[2], [1], [1], [2], [0, 0, 0, 1, 1, 2], [0], [0]>} : vector<2x8x8xbf16>, vector<2x8x128xbf16>, vector<2x8x128xf32> -> vector<2x8x128xf32>
    "tpu.trace_stop"() : () -> ()
    %34 = vector.shape_cast %33 : vector<2x8x128xf32> to vector<16x128xf32>
    %35 = arith.truncf %34 : vector<16x128xf32> to vector<16x128xbf16>
    %c0_12 = arith.constant 0 : index
    %c0_13 = arith.constant 0 : index
    %c0_14 = arith.constant 0 : index
    %36 = vector.load %arg7[%c0_12, %c0_13, %c0_14] : memref<1x128x128xbf16, #tpu.memory_space<vmem>>, vector<1x128x128xbf16>
    %37 = vector.shape_cast %36 : vector<1x128x128xbf16> to vector<128x128xbf16>
    %cst_15 = arith.constant dense<0.000000e+00> : vector<16x128xf32>
    %38 = tpu.matmul %35, %37, %cst_15 {dimension_numbers = #tpu.dot_dimension_numbers<[1], [0], [0], [1], [0, 0, 1, 1], [], []>} : vector<16x128xbf16>, vector<128x128xbf16>, vector<16x128xf32> -> vector<16x128xf32>
    %c0_16 = arith.constant 0 : index
    %c0_17 = arith.constant 0 : index
    %c0_18 = arith.constant 0 : index
    %39 = vector.load %arg8[%c0_16, %c0_17, %c0_18] : memref<1x1x128xf32, #tpu.memory_space<vmem>>, vector<1x1x128xf32>
    %40 = vector.shape_cast %39 : vector<1x1x128xf32> to vector<1x128xf32>
    %41 = vector.broadcast %40 : vector<1x128xf32> to vector<16x128xf32>
    %42 = arith.addf %38, %41 : vector<16x128xf32>
    %43 = arith.addf %3, %42 : vector<16x128xf32>
    %c0_19 = arith.constant 0 : index
    %c0_20 = arith.constant 0 : index
    %c0_21 = arith.constant 0 : index
    %44 = vector.load %arg9[%c0_19, %c0_20, %c0_21] : memref<1x1x128xf32, #tpu.memory_space<vmem>>, vector<1x1x128xf32>
    %45 = vector.shape_cast %44 : vector<1x1x128xf32> to vector<1x128xf32>
    %c0_22 = arith.constant 0 : index
    %c0_23 = arith.constant 0 : index
    %c0_24 = arith.constant 0 : index
    %46 = vector.load %arg10[%c0_22, %c0_23, %c0_24] : memref<1x1x128xf32, #tpu.memory_space<vmem>>, vector<1x1x128xf32>
    %47 = vector.shape_cast %46 : vector<1x1x128xf32> to vector<1x128xf32>
    %cst_25 = arith.constant dense<0.000000e+00> : vector<16xf32>
    %48 = vector.multi_reduction <add>, %43, %cst_25 [1] : vector<16x128xf32> to vector<16xf32>
    %49 = vector.shape_cast %48 : vector<16xf32> to vector<16x1xf32>
    %cst_26 = arith.constant 3.125000e-02 : f32
    %50 = vector.broadcast %cst_26 : f32 to vector<16x1xf32>
    %51 = arith.mulf %49, %50 : vector<16x1xf32>
    %52 = arith.mulf %43, %43 : vector<16x128xf32>
    %cst_27 = arith.constant dense<0.000000e+00> : vector<16xf32>
    %53 = vector.multi_reduction <add>, %52, %cst_27 [1] : vector<16x128xf32> to vector<16xf32>
    %54 = vector.shape_cast %53 : vector<16xf32> to vector<16x1xf32>
    %cst_28 = arith.constant 3.125000e-02 : f32
    %55 = vector.broadcast %cst_28 : f32 to vector<16x1xf32>
    %56 = arith.mulf %54, %55 : vector<16x1xf32>
    %57 = arith.mulf %51, %51 : vector<16x1xf32>
    %58 = arith.subf %56, %57 : vector<16x1xf32>
    %cst_29 = arith.constant 0.000000e+00 : f32
    %59 = vector.broadcast %cst_29 : f32 to vector<16x1xf32>
    %60 = arith.maximumf %58, %59 : vector<16x1xf32>
    %61 = vector.broadcast %51 : vector<16x1xf32> to vector<16x128xf32>
    %62 = arith.subf %43, %61 : vector<16x128xf32>
    %cst_30 = arith.constant 9.99999974E-6 : f32
    %63 = vector.broadcast %cst_30 : f32 to vector<16x1xf32>
    %64 = arith.addf %60, %63 : vector<16x1xf32>
    %65 = math.rsqrt %64 : vector<16x1xf32>
    %66 = vector.broadcast %65 : vector<16x1xf32> to vector<16x128xf32>
    %67 = arith.mulf %62, %66 : vector<16x128xf32>
    %68 = vector.broadcast %45 : vector<1x128xf32> to vector<16x128xf32>
    %69 = arith.mulf %67, %68 : vector<16x128xf32>
    %70 = vector.broadcast %47 : vector<1x128xf32> to vector<16x128xf32>
    %71 = arith.addf %69, %70 : vector<16x128xf32>
    %72 = arith.truncf %71 : vector<16x128xf32> to vector<16x128xbf16>
    %c0_31 = arith.constant 0 : index
    %c0_32 = arith.constant 0 : index
    %c0_33 = arith.constant 0 : index
    %73 = vector.load %arg11[%c0_31, %c0_32, %c0_33] : memref<1x128x128xbf16, #tpu.memory_space<vmem>>, vector<1x128x128xbf16>
    %74 = vector.shape_cast %73 : vector<1x128x128xbf16> to vector<128x128xbf16>
    %cst_34 = arith.constant dense<0.000000e+00> : vector<16x128xf32>
    %75 = tpu.matmul %72, %74, %cst_34 {dimension_numbers = #tpu.dot_dimension_numbers<[1], [0], [0], [1], [0, 0, 1, 1], [], []>} : vector<16x128xbf16>, vector<128x128xbf16>, vector<16x128xf32> -> vector<16x128xf32>
    %c0_35 = arith.constant 0 : index
    %c0_36 = arith.constant 0 : index
    %c0_37 = arith.constant 0 : index
    %76 = vector.load %arg12[%c0_35, %c0_36, %c0_37] : memref<1x1x128xf32, #tpu.memory_space<vmem>>, vector<1x1x128xf32>
    %77 = vector.shape_cast %76 : vector<1x1x128xf32> to vector<1x128xf32>
    %78 = vector.broadcast %77 : vector<1x128xf32> to vector<16x128xf32>
    %79 = arith.addf %75, %78 : vector<16x128xf32>
    %cst_38 = arith.constant 0.000000e+00 : f32
    %80 = vector.broadcast %cst_38 : f32 to vector<16x128xf32>
    %81 = arith.maximumf %79, %80 : vector<16x128xf32>
    %82 = arith.truncf %81 : vector<16x128xf32> to vector<16x128xbf16>
    %c0_39 = arith.constant 0 : index
    %c0_40 = arith.constant 0 : index
    %c0_41 = arith.constant 0 : index
    %83 = vector.load %arg13[%c0_39, %c0_40, %c0_41] : memref<1x128x128xbf16, #tpu.memory_space<vmem>>, vector<1x128x128xbf16>
    %84 = vector.shape_cast %83 : vector<1x128x128xbf16> to vector<128x128xbf16>
    %cst_42 = arith.constant dense<0.000000e+00> : vector<16x128xf32>
    %85 = tpu.matmul %82, %84, %cst_42 {dimension_numbers = #tpu.dot_dimension_numbers<[1], [0], [0], [1], [0, 0, 1, 1], [], []>} : vector<16x128xbf16>, vector<128x128xbf16>, vector<16x128xf32> -> vector<16x128xf32>
    %c0_43 = arith.constant 0 : index
    %c0_44 = arith.constant 0 : index
    %c0_45 = arith.constant 0 : index
    %86 = vector.load %arg14[%c0_43, %c0_44, %c0_45] : memref<1x1x128xf32, #tpu.memory_space<vmem>>, vector<1x1x128xf32>
    %87 = vector.shape_cast %86 : vector<1x1x128xf32> to vector<1x128xf32>
    %88 = vector.broadcast %87 : vector<1x128xf32> to vector<16x128xf32>
    %89 = arith.addf %85, %88 : vector<16x128xf32>
    %90 = arith.addf %71, %89 : vector<16x128xf32>
    %c0_46 = arith.constant 0 : index
    %c0_47 = arith.constant 0 : index
    %c0_48 = arith.constant 0 : index
    %91 = vector.load %arg15[%c0_46, %c0_47, %c0_48] : memref<1x1x128xf32, #tpu.memory_space<vmem>>, vector<1x1x128xf32>
    %92 = vector.shape_cast %91 : vector<1x1x128xf32> to vector<1x128xf32>
    %c0_49 = arith.constant 0 : index
    %c0_50 = arith.constant 0 : index
    %c0_51 = arith.constant 0 : index
    %93 = vector.load %arg16[%c0_49, %c0_50, %c0_51] : memref<1x1x128xf32, #tpu.memory_space<vmem>>, vector<1x1x128xf32>
    %94 = vector.shape_cast %93 : vector<1x1x128xf32> to vector<1x128xf32>
    %cst_52 = arith.constant dense<0.000000e+00> : vector<16xf32>
    %95 = vector.multi_reduction <add>, %90, %cst_52 [1] : vector<16x128xf32> to vector<16xf32>
    %96 = vector.shape_cast %95 : vector<16xf32> to vector<16x1xf32>
    %cst_53 = arith.constant 3.125000e-02 : f32
    %97 = vector.broadcast %cst_53 : f32 to vector<16x1xf32>
    %98 = arith.mulf %96, %97 : vector<16x1xf32>
    %99 = arith.mulf %90, %90 : vector<16x128xf32>
    %cst_54 = arith.constant dense<0.000000e+00> : vector<16xf32>
    %100 = vector.multi_reduction <add>, %99, %cst_54 [1] : vector<16x128xf32> to vector<16xf32>
    %101 = vector.shape_cast %100 : vector<16xf32> to vector<16x1xf32>
    %cst_55 = arith.constant 3.125000e-02 : f32
    %102 = vector.broadcast %cst_55 : f32 to vector<16x1xf32>
    %103 = arith.mulf %101, %102 : vector<16x1xf32>
    %104 = arith.mulf %98, %98 : vector<16x1xf32>
    %105 = arith.subf %103, %104 : vector<16x1xf32>
    %cst_56 = arith.constant 0.000000e+00 : f32
    %106 = vector.broadcast %cst_56 : f32 to vector<16x1xf32>
    %107 = arith.maximumf %105, %106 : vector<16x1xf32>
    %108 = vector.broadcast %98 : vector<16x1xf32> to vector<16x128xf32>
    %109 = arith.subf %90, %108 : vector<16x128xf32>
    %cst_57 = arith.constant 9.99999974E-6 : f32
    %110 = vector.broadcast %cst_57 : f32 to vector<16x1xf32>
    %111 = arith.addf %107, %110 : vector<16x1xf32>
    %112 = math.rsqrt %111 : vector<16x1xf32>
    %113 = vector.broadcast %112 : vector<16x1xf32> to vector<16x128xf32>
    %114 = arith.mulf %109, %113 : vector<16x128xf32>
    %115 = vector.broadcast %92 : vector<1x128xf32> to vector<16x128xf32>
    %116 = arith.mulf %114, %115 : vector<16x128xf32>
    %117 = vector.broadcast %94 : vector<1x128xf32> to vector<16x128xf32>
    %118 = arith.addf %116, %117 : vector<16x128xf32>
    %c0_58 = arith.constant 0 : index
    %c0_59 = arith.constant 0 : index
    %119 = vector.load %arg18[%c0_58, %c0_59] : memref<16x128xf32, #tpu.memory_space<vmem>>, vector<16x128xf32>
    tpu.vector_store %arg18[%c0_58, %c0_59], %118 {strides = array<i32>} : memref<16x128xf32, #tpu.memory_space<vmem>>, vector<16x128xf32>,
    %c3_i32 = arith.constant 3 : i32
    %120 = arith.cmpi eq, %arg1, %c3_i32 : i32
    %121 = arith.extui %120 : i1 to i32
    %c0_i32_60 = arith.constant 0 : i32
    %122 = arith.cmpi ne, %121, %c0_i32_60 : i32
    scf.if %122 {
      %123 = vector.shape_cast %118 : vector<16x128xf32> to vector<2x8x128xf32>
      %124 = vector.extract_strided_slice %123 {offsets = [0, 0, 0], sizes = [1, 8, 128], strides = [1, 1, 1]} : vector<2x8x128xf32> to vector<1x8x128xf32>
      %125 = vector.shape_cast %124 : vector<1x8x128xf32> to vector<8x128xf32>
      %c0_61 = arith.constant 0 : index
      %c0_62 = arith.constant 0 : index
      %c0_63 = arith.constant 0 : index
      %126 = vector.load %arg17[%c0_61, %c0_62, %c0_63] : memref<8x2x128xf32, #tpu.memory_space<vmem>>, vector<8x1x128xf32>
      %127 = vector.shape_cast %126 : vector<8x1x128xf32> to vector<8x128xf32>
      %128 = vector.shape_cast %125 : vector<8x128xf32> to vector<8x1x128xf32>
      tpu.vector_store %arg17[%c0_61, %c0_62, %c0_63], %128 {strides = array<i32>} : memref<8x2x128xf32, #tpu.memory_space<vmem>>, vector<8x1x128xf32>,
      %129 = vector.extract_strided_slice %123 {offsets = [1, 0, 0], sizes = [1, 8, 128], strides = [1, 1, 1]} : vector<2x8x128xf32> to vector<1x8x128xf32>
      %130 = vector.shape_cast %129 : vector<1x8x128xf32> to vector<8x128xf32>
      %c0_64 = arith.constant 0 : index
      %c1 = arith.constant 1 : index
      %c0_65 = arith.constant 0 : index
      %131 = vector.load %arg17[%c0_64, %c1, %c0_65] : memref<8x2x128xf32, #tpu.memory_space<vmem>>, vector<8x1x128xf32>
      %132 = vector.shape_cast %131 : vector<8x1x128xf32> to vector<8x128xf32>
      %133 = vector.shape_cast %130 : vector<8x128xf32> to vector<8x1x128xf32>
      tpu.vector_store %arg17[%c0_64, %c1, %c0_65], %133 {strides = array<i32>} : memref<8x2x128xf32, #tpu.memory_space<vmem>>, vector<8x1x128xf32>,
    } else {
    }
    return
  }
  func.func @transform_0(%arg0: i32, %arg1: i32) -> (i32, i32, i32) {
    %c0_i32 = arith.constant 0 : i32
    %c0_i32_0 = arith.constant 0 : i32
    %c0_i32_1 = arith.constant 0 : i32
    return %arg0, %c0_i32, %c0_i32_0 : i32, i32, i32
  }
  func.func @transform_1(%arg0: i32, %arg1: i32) -> (i32, i32) {
    %c0_i32 = arith.constant 0 : i32
    %c0_i32_0 = arith.constant 0 : i32
    %c0_i32_1 = arith.constant 0 : i32
    return %c0_i32, %c0_i32_0 : i32, i32
  }
  func.func @transform_2(%arg0: i32, %arg1: i32) -> (i32, i32) {
    %c0_i32 = arith.constant 0 : i32
    %c0_i32_0 = arith.constant 0 : i32
    %c0_i32_1 = arith.constant 0 : i32
    return %c0_i32, %c0_i32_0 : i32, i32
  }
  func.func @transform_3(%arg0: i32, %arg1: i32) -> (i32, i32, i32) {
    %c0_i32 = arith.constant 0 : i32
    %c0_i32_0 = arith.constant 0 : i32
    %c0_i32_1 = arith.constant 0 : i32
    return %arg1, %c0_i32, %c0_i32_0 : i32, i32, i32
  }
  func.func @transform_4(%arg0: i32, %arg1: i32) -> (i32, i32, i32) {
    %c0_i32 = arith.constant 0 : i32
    %c0_i32_0 = arith.constant 0 : i32
    %c0_i32_1 = arith.constant 0 : i32
    return %arg1, %c0_i32, %c0_i32_0 : i32, i32, i32
  }
  func.func @transform_5(%arg0: i32, %arg1: i32) -> (i32, i32, i32) {
    %c0_i32 = arith.constant 0 : i32
    %c0_i32_0 = arith.constant 0 : i32
    %c0_i32_1 = arith.constant 0 : i32
    return %arg1, %c0_i32, %c0_i32_0 : i32, i32, i32
  }
  func.func @transform_6(%arg0: i32, %arg1: i32) -> (i32, i32, i32) {
    %c0_i32 = arith.constant 0 : i32
    %c0_i32_0 = arith.constant 0 : i32
    %c0_i32_1 = arith.constant 0 : i32
    return %arg1, %c0_i32, %c0_i32_0 : i32, i32, i32
  }
  func.func @transform_7(%arg0: i32, %arg1: i32) -> (i32, i32, i32) {
    %c0_i32 = arith.constant 0 : i32
    %c0_i32_0 = arith.constant 0 : i32
    %c0_i32_1 = arith.constant 0 : i32
    return %arg1, %c0_i32, %c0_i32_0 : i32, i32, i32
  }
  func.func @transform_8(%arg0: i32, %arg1: i32) -> (i32, i32, i32) {
    %c0_i32 = arith.constant 0 : i32
    %c0_i32_0 = arith.constant 0 : i32
    %c0_i32_1 = arith.constant 0 : i32
    return %arg1, %c0_i32, %c0_i32_0 : i32, i32, i32
  }
  func.func @transform_9(%arg0: i32, %arg1: i32) -> (i32, i32, i32) {
    %c0_i32 = arith.constant 0 : i32
    %c0_i32_0 = arith.constant 0 : i32
    %c0_i32_1 = arith.constant 0 : i32
    return %arg1, %c0_i32, %c0_i32_0 : i32, i32, i32
  }
  func.func @transform_10(%arg0: i32, %arg1: i32) -> (i32, i32, i32) {
    %c0_i32 = arith.constant 0 : i32
    %c0_i32_0 = arith.constant 0 : i32
    %c0_i32_1 = arith.constant 0 : i32
    return %arg1, %c0_i32, %c0_i32_0 : i32, i32, i32
  }
  func.func @transform_11(%arg0: i32, %arg1: i32) -> (i32, i32, i32) {
    %c0_i32 = arith.constant 0 : i32
    %c0_i32_0 = arith.constant 0 : i32
    %c0_i32_1 = arith.constant 0 : i32
    return %arg1, %c0_i32, %c0_i32_0 : i32, i32, i32
  }
  func.func @transform_12(%arg0: i32, %arg1: i32) -> (i32, i32, i32) {
    %c0_i32 = arith.constant 0 : i32
    %c0_i32_0 = arith.constant 0 : i32
    %c0_i32_1 = arith.constant 0 : i32
    return %arg1, %c0_i32, %c0_i32_0 : i32, i32, i32
  }
  func.func @transform_13(%arg0: i32, %arg1: i32) -> (i32, i32, i32) {
    %c0_i32 = arith.constant 0 : i32
    %c0_i32_0 = arith.constant 0 : i32
    %c0_i32_1 = arith.constant 0 : i32
    return %arg1, %c0_i32, %c0_i32_0 : i32, i32, i32
  }
  func.func @transform_14(%arg0: i32, %arg1: i32) -> (i32, i32, i32) {
    %c0_i32 = arith.constant 0 : i32
    %c0_i32_0 = arith.constant 0 : i32
    %c0_i32_1 = arith.constant 0 : i32
    return %arg1, %c0_i32, %c0_i32_0 : i32, i32, i32
  }
  func.func @transform_15(%arg0: i32, %arg1: i32) -> (i32, i32, i32) {
    %c0_i32 = arith.constant 0 : i32
    %c0_i32_0 = arith.constant 0 : i32
    %c0_i32_1 = arith.constant 0 : i32
    return %c0_i32, %arg0, %c0_i32_0 : i32, i32, i32
  }
}

</mosaic_0001>

<llo_original>
// kernel: trans_encoder_forward.1
$region0: #{trans_encoder_forward.1}
  #allocation0 [shape = 'u32[]', space=smem, size = 0x4, offset = 0x4, fixed_abs, tag = 'smem constant byte address 0x4 - core index']
  #allocation1 [shape = 'u32[144,128]{1,0:T(1,128)}', space=vmem, size = 0x12000, scoped, tag = 'internal scratch']
  #allocation2 [shape = 'f32[16,128]{1,0:T(8,128)}', space=vmem, size = 0x2000, scoped, tag = 'scratch operand']
  %s0 = inlined_call_operand.hbm [shape: f32[2,8,16], index: 0, kind: input, shape index: {}]
  %s1 = inlined_call_operand.vmem [shape: bf16[16,128], index: 1, kind: input, shape index: {}]
  %s2 = inlined_call_operand.vmem [shape: f32[1,128], index: 2, kind: input, shape index: {}]
  %s3 = inlined_call_operand.hbm [shape: bf16[4,128,384], index: 3, kind: input, shape index: {}]
  %s4 = inlined_call_operand.vmem [shape: f32[4,1,384], index: 4, kind: input, shape index: {}]
  %s5 = inlined_call_operand.hbm [shape: bf16[4,128,128], index: 5, kind: input, shape index: {}]
  %s6 = inlined_call_operand.hbm [shape: f32[4,1,128], index: 6, kind: input, shape index: {}]
  %s7 = inlined_call_operand.vmem [shape: f32[4,1,128], index: 7, kind: input, shape index: {}]
  %s8 = inlined_call_operand.vmem [shape: f32[4,1,128], index: 8, kind: input, shape index: {}]
  %s9 = inlined_call_operand.hbm [shape: bf16[4,128,128], index: 9, kind: input, shape index: {}]
  %s10 = inlined_call_operand.hbm [shape: f32[4,1,128], index: 10, kind: input, shape index: {}]
  %s11 = inlined_call_operand.hbm [shape: bf16[4,128,128], index: 11, kind: input, shape index: {}]
  %s12 = inlined_call_operand.hbm [shape: f32[4,1,128], index: 12, kind: input, shape index: {}]
  %s13 = inlined_call_operand.vmem [shape: f32[4,1,128], index: 13, kind: input, shape index: {}]
  %s14 = inlined_call_operand.vmem [shape: f32[4,1,128], index: 14, kind: input, shape index: {}]
  %s15 = inlined_call_operand.hbm [shape: f32[8,2,128], index: 15, kind: output, shape index: {}]
  %s16 = sld [smem:[#allocation0]]
  $region133: #{trans_encoder_forward.1} parent=0
    _
  %s18 = ssub.s32 1, %s16
  %s19 = scalar_select 0, %s18, %s16
  $region1: #{trans_encoder_forward.1} parent=0
    #allocation3 [shape = 'u8[8192]{0}', space=vmem, size = 0x2000, scoped, tag = 'input window, operand 0, single buffered']
    #allocation4 [shape = 's32[2]{0}', space=sflag, size = 0x8, scoped, tag = 'scoped memory for trans_encoder_forward.1']
    #allocation5 [shape = 's32[2]{0}', space=sflag, size = 0x8, scoped, tag = 'scoped memory for trans_encoder_forward.1']
    #allocation6 [shape = 'u8[196608]{0}', space=vmem, size = 0x30000, scoped, tag = 'input window, operand 3']
    #allocation7 [shape = 's32[2]{0}', space=sflag, size = 0x8, scoped, tag = 'scoped memory for trans_encoder_forward.1']
    #allocation8 [shape = 'u8[65536]{0}', space=vmem, size = 0x10000, scoped, tag = 'input window, operand 5']
    #allocation9 [shape = 'u8[1024]{0}', space=vmem, size = 0x400, scoped, tag = 'input window, operand 6']
    #allocation10 [shape = 's32[2]{0}', space=sflag, size = 0x8, scoped, tag = 'scoped memory for trans_encoder_forward.1']
    #allocation11 [shape = 'u8[65536]{0}', space=vmem, size = 0x10000, scoped, tag = 'input window, operand 9']
    #allocation12 [shape = 'u8[1024]{0}', space=vmem, size = 0x400, scoped, tag = 'input window, operand 10']
    #allocation13 [shape = 's32[2]{0}', space=sflag, size = 0x8, scoped, tag = 'scoped memory for trans_encoder_forward.1']
    #allocation14 [shape = 'u8[65536]{0}', space=vmem, size = 0x10000, scoped, tag = 'input window, operand 11']
    #allocation15 [shape = 'u8[1024]{0}', space=vmem, size = 0x400, scoped, tag = 'input window, operand 12']
    #allocation16 [shape = 's32[2]{0}', space=sflag, size = 0x8, scoped, tag = 'scoped memory for trans_encoder_forward.1']
    #allocation17 [shape = 'u8[8192]{0}', space=vmem, size = 0x2000, scoped, tag = 'output window, operand 0, single buffered']
    %20 = vsyncpa [#allocation4], 0
    %21 = vsyncpa [#allocation7], 0
    %s22 = scalar_lea.sflag [#allocation7], 1
    %23 = vsyncpa %s22, 0
    %24 = vsyncpa [#allocation10], 0
    %s25 = scalar_lea.sflag [#allocation10], 1
    %26 = vsyncpa %s25, 0
    %27 = vsyncpa [#allocation13], 0
    %s28 = scalar_lea.sflag [#allocation13], 1
    %29 = vsyncpa %s28, 0
    %30 = vsyncpa [#allocation16], 0
    %s31 = scalar_lea.sflag [#allocation16], 1
    %32 = vsyncpa %s31, 0
    %33 = vsyncpa [#allocation5], 0
    loop: start=0, step=1, limit=6
    $region2: #{trans_encoder_forward.1} parent=1 // loop_pre_header
      _
    $region3: #{trans_encoder_forward.1} parent=1 // loop_header
      %s35 = sphi 0, %s39
      %p36 = scmp.ge.s32.totalorder %s35, 6
      %s42 = sphi 0, %s54
      %s43 = sphi 0, %s50
      %s44 = sphi 0, %s42
      %s45 = sphi 0, %s43
      %s46 = sphi 0, %s44
      %s47 = sphi 0, %s45
      %s57 = sphi 0, %s59
      %s60 = sphi 0, %s57
      %s61 = sphi 0, %s60
      %s77 = sphi 0, %s61
      %s81 = sphi 0, %s81
      %s83 = sphi 0, %s81
      %s84 = sphi 0, %s83
      %s98 = sphi 0, %s84
      %s102 = sphi 0, %s102
      %s104 = sphi 0, %s102
      %s105 = sphi 0, %s104
      %s119 = sphi 0, %s105
      %s125 = sphi 0, %s127
      %s128 = sphi 0, %s125
      %s129 = sphi 0, %s128
      %s145 = sphi 0, %s129
      %s151 = sphi 0, %s153
      %s154 = sphi 0, %s151
      %s155 = sphi 0, %s154
      %s171 = sphi 0, %s155
      %s177 = sphi 0, %s179
      %s180 = sphi 0, %s177
      %s181 = sphi 0, %s180
      %s197 = sphi 0, %s181
      %s203 = sphi 0, %s205
      %s206 = sphi 0, %s203
      %s207 = sphi 0, %s206
      %s223 = sphi 0, %s207
      %s229 = sphi 0, %s231
      %s232 = sphi 0, %s229
      %s233 = sphi 0, %s232
      %s249 = sphi 0, %s233
      %s255 = sphi 0, %s257
      %s258 = sphi 0, %s255
      %s259 = sphi 0, %s258
      %s275 = sphi 0, %s259
      %s281 = sphi 0, %s283
      %s284 = sphi 0, %s281
      %s285 = sphi 0, %s284
      %s301 = sphi 0, %s285
      %s307 = sphi 0, %s309
      %s310 = sphi 0, %s307
      %s311 = sphi 0, %s310
      %s327 = sphi 0, %s311
      %s333 = sphi 0, %s335
      %s336 = sphi 0, %s333
      %s337 = sphi 0, %s336
      %s353 = sphi 0, %s337
      %s359 = sphi 0, %s361
      %s362 = sphi 0, %s359
      %s363 = sphi 0, %s362
      %s379 = sphi 0, %s363
      %s385 = sphi 0, %s387
      %s388 = sphi 0, %s385
      %s389 = sphi 0, %s388
      %s405 = sphi 0, %s389
      %s411 = sphi 0, %s413
      %s414 = sphi 0, %s411
      %s415 = sphi 0, %s414
      %s431 = sphi 0, %s415
      %s437 = sphi 0, %s439
      %s440 = sphi 0, %s437
      %s441 = sphi 0, %s440
      %s457 = sphi 0, %s441
    $region4: #{trans_encoder_forward.1} parent=1 // loop_header_branch
      %38 = sbr.rel (%p36) target = $region8
    $region5: #{trans_encoder_forward.1} parent=1 // loop_body
      %s40 = ssub.s32 %s35, 1
      %s41 = ssub.s32 %s35, 2
      %s48 = sadd.s32 1, %s43
      %p49 = scmp.ge.s32.totalorder %s48, 4
      %s50 = scalar_select %p49, 0, %s48
      %s51 = sadd.s32 1, %s42
      %s52 = scalar_select %p49, %s51, %s42
      %p53 = scmp.ge.s32.totalorder %s52, 1
      %s54 = scalar_select %p53, 0, %s52
      %s55 = ssub.s32 %s42, %s54
      %p56 = scmp.eq.s32.totalorder %s55, 0
      %s58 = sadd.s32 %s57, 1
      %s59 = scalar_select %p56, %s57, %s58
      %p62 = pneg %p56
      %p63 = scmp.eq.s32.totalorder %s35, 3
      %p64 = por %p62, %p63
      %p65 = scmp.ne.s32.totalorder %s57, %s60
      %p66 = scmp.eq.s32.totalorder %s35, 0
      %p67 = por %p65, %p66
      %p68 = scmp.ne.s32.totalorder %s57, %s60
      %p69 = scmp.eq.s32.totalorder %s40, 3
      %p70 = por %p68, %p69
      %p71 = scmp.ne.s32.totalorder %s60, %s61
      %p72 = scmp.eq.s32.totalorder %s40, 0
      %p73 = por %p71, %p72
      %p74 = scmp.ne.s32.totalorder %s60, %s61
      %p75 = scmp.eq.s32.totalorder %s41, 3
      %p76 = por %p74, %p75
      %p78 = scmp.ne.s32.totalorder %s61, %s77
      %p79 = scmp.eq.s32.totalorder %s41, 0
      %p80 = por %p78, %p79
      %s82 = sadd.s32 %s81, 1
      %p85 = scmp.eq.s32.totalorder %s35, 3
      %p86 = scmp.ne.s32.totalorder %s81, %s83
      %p87 = scmp.eq.s32.totalorder %s35, 0
      %p88 = por %p86, %p87
      %p89 = scmp.ne.s32.totalorder %s81, %s83
      %p90 = scmp.eq.s32.totalorder %s40, 3
      %p91 = por %p89, %p90
      %p92 = scmp.ne.s32.totalorder %s83, %s84
      %p93 = scmp.eq.s32.totalorder %s40, 0
      %p94 = por %p92, %p93
      %p95 = scmp.ne.s32.totalorder %s83, %s84
      %p96 = scmp.eq.s32.totalorder %s41, 3
      %p97 = por %p95, %p96
      %p99 = scmp.ne.s32.totalorder %s84, %s98
      %p100 = scmp.eq.s32.totalorder %s41, 0
      %p101 = por %p99, %p100
      %s103 = sadd.s32 %s102, 1
      %p106 = scmp.eq.s32.totalorder %s35, 3
      %p107 = scmp.ne.s32.totalorder %s102, %s104
      %p108 = scmp.eq.s32.totalorder %s35, 0
      %p109 = por %p107, %p108
      %p110 = scmp.ne.s32.totalorder %s102, %s104
      %p111 = scmp.eq.s32.totalorder %s40, 3
      %p112 = por %p110, %p111
      %p113 = scmp.ne.s32.totalorder %s104, %s105
      %p114 = scmp.eq.s32.totalorder %s40, 0
      %p115 = por %p113, %p114
      %p116 = scmp.ne.s32.totalorder %s104, %s105
      %p117 = scmp.eq.s32.totalorder %s41, 3
      %p118 = por %p116, %p117
      %p120 = scmp.ne.s32.totalorder %s105, %s119
      %p121 = scmp.eq.s32.totalorder %s41, 0
      %p122 = por %p120, %p121
      %s123 = ssub.s32 %s43, %s50
      %p124 = scmp.eq.s32.totalorder %s123, 0
      %s126 = sadd.s32 %s125, 1
      %s127 = scalar_select %p124, %s125, %s126
      %p130 = pneg %p124
      %p131 = scmp.eq.s32.totalorder %s35, 3
      %p132 = por %p130, %p131
      %p133 = scmp.ne.s32.totalorder %s125, %s128
      %p134 = scmp.eq.s32.totalorder %s35, 0
      %p135 = por %p133, %p134
      %p136 = scmp.ne.s32.totalorder %s125, %s128
      %p137 = scmp.eq.s32.totalorder %s40, 3
      %p138 = por %p136, %p137
      %p139 = scmp.ne.s32.totalorder %s128, %s129
      %p140 = scmp.eq.s32.totalorder %s40, 0
      %p141 = por %p139, %p140
      %p142 = scmp.ne.s32.totalorder %s128, %s129
      %p143 = scmp.eq.s32.totalorder %s41, 3
      %p144 = por %p142, %p143
      %p146 = scmp.ne.s32.totalorder %s129, %s145
      %p147 = scmp.eq.s32.totalorder %s41, 0
      %p148 = por %p146, %p147
      %s149 = ssub.s32 %s43, %s50
      %p150 = scmp.eq.s32.totalorder %s149, 0
      %s152 = sadd.s32 %s151, 1
      %s153 = scalar_select %p150, %s151, %s152
      %p156 = pneg %p150
      %p157 = scmp.eq.s32.totalorder %s35, 3
      %p158 = por %p156, %p157
      %p159 = scmp.ne.s32.totalorder %s151, %s154
      %p160 = scmp.eq.s32.totalorder %s35, 0
      %p161 = por %p159, %p160
      %p162 = scmp.ne.s32.totalorder %s151, %s154
      %p163 = scmp.eq.s32.totalorder %s40, 3
      %p164 = por %p162, %p163
      %p165 = scmp.ne.s32.totalorder %s154, %s155
      %p166 = scmp.eq.s32.totalorder %s40, 0
      %p167 = por %p165, %p166
      %p168 = scmp.ne.s32.totalorder %s154, %s155
      %p169 = scmp.eq.s32.totalorder %s41, 3
      %p170 = por %p168, %p169
      %p172 = scmp.ne.s32.totalorder %s155, %s171
      %p173 = scmp.eq.s32.totalorder %s41, 0
      %p174 = por %p172, %p173
      %s175 = ssub.s32 %s43, %s50
      %p176 = scmp.eq.s32.totalorder %s175, 0
      %s178 = sadd.s32 %s177, 1
      %s179 = scalar_select %p176, %s177, %s178
      %p182 = pneg %p176
      %p183 = scmp.eq.s32.totalorder %s35, 3
      %p184 = por %p182, %p183
      %p185 = scmp.ne.s32.totalorder %s177, %s180
      %p186 = scmp.eq.s32.totalorder %s35, 0
      %p187 = por %p185, %p186
      %p188 = scmp.ne.s32.totalorder %s177, %s180
      %p189 = scmp.eq.s32.totalorder %s40, 3
      %p190 = por %p188, %p189
      %p191 = scmp.ne.s32.totalorder %s180, %s181
      %p192 = scmp.eq.s32.totalorder %s40, 0
      %p193 = por %p191, %p192
      %p194 = scmp.ne.s32.totalorder %s180, %s181
      %p195 = scmp.eq.s32.totalorder %s41, 3
      %p196 = por %p194, %p195
      %p198 = scmp.ne.s32.totalorder %s181, %s197
      %p199 = scmp.eq.s32.totalorder %s41, 0
      %p200 = por %p198, %p199
      %s201 = ssub.s32 %s43, %s50
      %p202 = scmp.eq.s32.totalorder %s201, 0
      %s204 = sadd.s32 %s203, 1
      %s205 = scalar_select %p202, %s203, %s204
      %p208 = pneg %p202
      %p209 = scmp.eq.s32.totalorder %s35, 3
      %p210 = por %p208, %p209
      %p211 = scmp.ne.s32.totalorder %s203, %s206
      %p212 = scmp.eq.s32.totalorder %s35, 0
      %p213 = por %p211, %p212
      %p214 = scmp.ne.s32.totalorder %s203, %s206
      %p215 = scmp.eq.s32.totalorder %s40, 3
      %p216 = por %p214, %p215
      %p217 = scmp.ne.s32.totalorder %s206, %s207
      %p218 = scmp.eq.s32.totalorder %s40, 0
      %p219 = por %p217, %p218
      %p220 = scmp.ne.s32.totalorder %s206, %s207
      %p221 = scmp.eq.s32.totalorder %s41, 3
      %p222 = por %p220, %p221
      %p224 = scmp.ne.s32.totalorder %s207, %s223
      %p225 = scmp.eq.s32.totalorder %s41, 0
      %p226 = por %p224, %p225
      %s227 = ssub.s32 %s43, %s50
      %p228 = scmp.eq.s32.totalorder %s227, 0
      %s230 = sadd.s32 %s229, 1
      %s231 = scalar_select %p228, %s229, %s230
      %p234 = pneg %p228
      %p235 = scmp.eq.s32.totalorder %s35, 3
      %p236 = por %p234, %p235
      %p237 = scmp.ne.s32.totalorder %s229, %s232
      %p238 = scmp.eq.s32.totalorder %s35, 0
      %p239 = por %p237, %p238
      %p240 = scmp.ne.s32.totalorder %s229, %s232
      %p241 = scmp.eq.s32.totalorder %s40, 3
      %p242 = por %p240, %p241
      %p243 = scmp.ne.s32.totalorder %s232, %s233
      %p244 = scmp.eq.s32.totalorder %s40, 0
      %p245 = por %p243, %p244
      %p246 = scmp.ne.s32.totalorder %s232, %s233
      %p247 = scmp.eq.s32.totalorder %s41, 3
      %p248 = por %p246, %p247
      %p250 = scmp.ne.s32.totalorder %s233, %s249
      %p251 = scmp.eq.s32.totalorder %s41, 0
      %p252 = por %p250, %p251
      %s253 = ssub.s32 %s43, %s50
      %p254 = scmp.eq.s32.totalorder %s253, 0
      %s256 = sadd.s32 %s255, 1
      %s257 = scalar_select %p254, %s255, %s256
      %p260 = pneg %p254
      %p261 = scmp.eq.s32.totalorder %s35, 3
      %p262 = por %p260, %p261
      %p263 = scmp.ne.s32.totalorder %s255, %s258
      %p264 = scmp.eq.s32.totalorder %s35, 0
      %p265 = por %p263, %p264
      %p266 = scmp.ne.s32.totalorder %s255, %s258
      %p267 = scmp.eq.s32.totalorder %s40, 3
      %p268 = por %p266, %p267
      %p269 = scmp.ne.s32.totalorder %s258, %s259
      %p270 = scmp.eq.s32.totalorder %s40, 0
      %p271 = por %p269, %p270
      %p272 = scmp.ne.s32.totalorder %s258, %s259
      %p273 = scmp.eq.s32.totalorder %s41, 3
      %p274 = por %p272, %p273
      %p276 = scmp.ne.s32.totalorder %s259, %s275
      %p277 = scmp.eq.s32.totalorder %s41, 0
      %p278 = por %p276, %p277
      %s279 = ssub.s32 %s43, %s50
      %p280 = scmp.eq.s32.totalorder %s279, 0
      %s282 = sadd.s32 %s281, 1
      %s283 = scalar_select %p280, %s281, %s282
      %p286 = pneg %p280
      %p287 = scmp.eq.s32.totalorder %s35, 3
      %p288 = por %p286, %p287
      %p289 = scmp.ne.s32.totalorder %s281, %s284
      %p290 = scmp.eq.s32.totalorder %s35, 0
      %p291 = por %p289, %p290
      %p292 = scmp.ne.s32.totalorder %s281, %s284
      %p293 = scmp.eq.s32.totalorder %s40, 3
      %p294 = por %p292, %p293
      %p295 = scmp.ne.s32.totalorder %s284, %s285
      %p296 = scmp.eq.s32.totalorder %s40, 0
      %p297 = por %p295, %p296
      %p298 = scmp.ne.s32.totalorder %s284, %s285
      %p299 = scmp.eq.s32.totalorder %s41, 3
      %p300 = por %p298, %p299
      %p302 = scmp.ne.s32.totalorder %s285, %s301
      %p303 = scmp.eq.s32.totalorder %s41, 0
      %p304 = por %p302, %p303
      %s305 = ssub.s32 %s43, %s50
      %p306 = scmp.eq.s32.totalorder %s305, 0
      %s308 = sadd.s32 %s307, 1
      %s309 = scalar_select %p306, %s307, %s308
      %p312 = pneg %p306
      %p313 = scmp.eq.s32.totalorder %s35, 3
      %p314 = por %p312, %p313
      %p315 = scmp.ne.s32.totalorder %s307, %s310
      %p316 = scmp.eq.s32.totalorder %s35, 0
      %p317 = por %p315, %p316
      %p318 = scmp.ne.s32.totalorder %s307, %s310
      %p319 = scmp.eq.s32.totalorder %s40, 3
      %p320 = por %p318, %p319
      %p321 = scmp.ne.s32.totalorder %s310, %s311
      %p322 = scmp.eq.s32.totalorder %s40, 0
      %p323 = por %p321, %p322
      %p324 = scmp.ne.s32.totalorder %s310, %s311
      %p325 = scmp.eq.s32.totalorder %s41, 3
      %p326 = por %p324, %p325
      %p328 = scmp.ne.s32.totalorder %s311, %s327
      %p329 = scmp.eq.s32.totalorder %s41, 0
      %p330 = por %p328, %p329
      %s331 = ssub.s32 %s43, %s50
      %p332 = scmp.eq.s32.totalorder %s331, 0
      %s334 = sadd.s32 %s333, 1
      %s335 = scalar_select %p332, %s333, %s334
      %p338 = pneg %p332
      %p339 = scmp.eq.s32.totalorder %s35, 3
      %p340 = por %p338, %p339
      %p341 = scmp.ne.s32.totalorder %s333, %s336
      %p342 = scmp.eq.s32.totalorder %s35, 0
      %p343 = por %p341, %p342
      %p344 = scmp.ne.s32.totalorder %s333, %s336
      %p345 = scmp.eq.s32.totalorder %s40, 3
      %p346 = por %p344, %p345
      %p347 = scmp.ne.s32.totalorder %s336, %s337
      %p348 = scmp.eq.s32.totalorder %s40, 0
      %p349 = por %p347, %p348
      %p350 = scmp.ne.s32.totalorder %s336, %s337
      %p351 = scmp.eq.s32.totalorder %s41, 3
      %p352 = por %p350, %p351
      %p354 = scmp.ne.s32.totalorder %s337, %s353
      %p355 = scmp.eq.s32.totalorder %s41, 0
      %p356 = por %p354, %p355
      %s357 = ssub.s32 %s43, %s50
      %p358 = scmp.eq.s32.totalorder %s357, 0
      %s360 = sadd.s32 %s359, 1
      %s361 = scalar_select %p358, %s359, %s360
      %p364 = pneg %p358
      %p365 = scmp.eq.s32.totalorder %s35, 3
      %p366 = por %p364, %p365
      %p367 = scmp.ne.s32.totalorder %s359, %s362
      %p368 = scmp.eq.s32.totalorder %s35, 0
      %p369 = por %p367, %p368
      %p370 = scmp.ne.s32.totalorder %s359, %s362
      %p371 = scmp.eq.s32.totalorder %s40, 3
      %p372 = por %p370, %p371
      %p373 = scmp.ne.s32.totalorder %s362, %s363
      %p374 = scmp.eq.s32.totalorder %s40, 0
      %p375 = por %p373, %p374
      %p376 = scmp.ne.s32.totalorder %s362, %s363
      %p377 = scmp.eq.s32.totalorder %s41, 3
      %p378 = por %p376, %p377
      %p380 = scmp.ne.s32.totalorder %s363, %s379
      %p381 = scmp.eq.s32.totalorder %s41, 0
      %p382 = por %p380, %p381
      %s383 = ssub.s32 %s43, %s50
      %p384 = scmp.eq.s32.totalorder %s383, 0
      %s386 = sadd.s32 %s385, 1
      %s387 = scalar_select %p384, %s385, %s386
      %p390 = pneg %p384
      %p391 = scmp.eq.s32.totalorder %s35, 3
      %p392 = por %p390, %p391
      %p393 = scmp.ne.s32.totalorder %s385, %s388
      %p394 = scmp.eq.s32.totalorder %s35, 0
      %p395 = por %p393, %p394
      %p396 = scmp.ne.s32.totalorder %s385, %s388
      %p397 = scmp.eq.s32.totalorder %s40, 3
      %p398 = por %p396, %p397
      %p399 = scmp.ne.s32.totalorder %s388, %s389
      %p400 = scmp.eq.s32.totalorder %s40, 0
      %p401 = por %p399, %p400
      %p402 = scmp.ne.s32.totalorder %s388, %s389
      %p403 = scmp.eq.s32.totalorder %s41, 3
      %p404 = por %p402, %p403
      %p406 = scmp.ne.s32.totalorder %s389, %s405
      %p407 = scmp.eq.s32.totalorder %s41, 0
      %p408 = por %p406, %p407
      %s409 = ssub.s32 %s43, %s50
      %p410 = scmp.eq.s32.totalorder %s409, 0
      %s412 = sadd.s32 %s411, 1
      %s413 = scalar_select %p410, %s411, %s412
      %p416 = pneg %p410
      %p417 = scmp.eq.s32.totalorder %s35, 3
      %p418 = por %p416, %p417
      %p419 = scmp.ne.s32.totalorder %s411, %s414
      %p420 = scmp.eq.s32.totalorder %s35, 0
      %p421 = por %p419, %p420
      %p422 = scmp.ne.s32.totalorder %s411, %s414
      %p423 = scmp.eq.s32.totalorder %s40, 3
      %p424 = por %p422, %p423
      %p425 = scmp.ne.s32.totalorder %s414, %s415
      %p426 = scmp.eq.s32.totalorder %s40, 0
      %p427 = por %p425, %p426
      %p428 = scmp.ne.s32.totalorder %s414, %s415
      %p429 = scmp.eq.s32.totalorder %s41, 3
      %p430 = por %p428, %p429
      %p432 = scmp.ne.s32.totalorder %s415, %s431
      %p433 = scmp.eq.s32.totalorder %s41, 0
      %p434 = por %p432, %p433
      %s435 = ssub.s32 %s42, %s54
      %p436 = scmp.eq.s32.totalorder %s435, 0
      %s438 = sadd.s32 %s437, 1
      %s439 = scalar_select %p436, %s437, %s438
      %p442 = pneg %p436
      %p443 = scmp.eq.s32.totalorder %s35, 3
      %p444 = por %p442, %p443
      %p445 = scmp.ne.s32.totalorder %s437, %s440
      %p446 = scmp.eq.s32.totalorder %s35, 0
      %p447 = por %p445, %p446
      %p448 = scmp.ne.s32.totalorder %s437, %s440
      %p449 = scmp.eq.s32.totalorder %s40, 3
      %p450 = por %p448, %p449
      %p451 = scmp.ne.s32.totalorder %s440, %s441
      %p452 = scmp.eq.s32.totalorder %s40, 0
      %p453 = por %p451, %p452
      %p454 = scmp.ne.s32.totalorder %s440, %s441
      %p455 = scmp.eq.s32.totalorder %s41, 3
      %p456 = por %p454, %p455
      %p458 = scmp.ne.s32.totalorder %s441, %s457
      %p459 = scmp.eq.s32.totalorder %s41, 0
      %p460 = por %p458, %p459
      %p461 = scmp.le.s32.totalorder 1, %s35
      %p462 = scmp.lt.s32.totalorder %s35, 5
      %p463 = pnand %p461, %p462
      %p464 = pneg %p463
      // Predicated region
      $region9: #{trans_encoder_forward.1} parent=5 // pred_check
        _
      $region10: #{trans_encoder_forward.1} parent=5 // pred_check_branch
        %466 = sbr.rel (%p463) target = $region12
      $region11: #{trans_encoder_forward.1} parent=5 // pred_region
        %s467 = ssub.s32 %s35, 1
        // Predicated region
        $region13: #{trans_encoder_forward.1} parent=11 // pred_check
          %p468 = pneg %p73
        $region14: #{trans_encoder_forward.1} parent=11 // pred_check_branch
          %470 = sbr.rel (%p468) target = $region16
        $region15: #{trans_encoder_forward.1} parent=11 // pred_region
          %s471 = smul.u32 2, %s44
          %s473 = ssub.s32 256, 256
          %474 = vsyncadd [#allocation4], %s473
          %s475 = smul.addr %s471, 128
          %s476 = scalar_lea.hbm %s0, %s475
          %s477 = sshll.u32 [#allocation3], 4
          %s478 = int_to_ptr.vmem [resolvable:$true] %s477
          %483 = dma.hbm_to_vmem [thread:$0]  %s476, 256, %s478, [#allocation4], 128, 128, 8
        $region16: #{trans_encoder_forward.1} parent=11 // pred_fallthru
          _
        // Predicated region
        $region17: #{trans_encoder_forward.1} parent=11 // pred_check
          %p484 = pneg %p94
        $region18: #{trans_encoder_forward.1} parent=11 // pred_check_branch
          %486 = sbr.rel (%p484) target = $region20
        $region19: #{trans_encoder_forward.1} parent=11 // pred_region
          _
        $region20: #{trans_encoder_forward.1} parent=11 // pred_fallthru
          _
        // Predicated region
        $region21: #{trans_encoder_forward.1} parent=11 // pred_check
          %p487 = pneg %p115
        $region22: #{trans_encoder_forward.1} parent=11 // pred_check_branch
          %489 = sbr.rel (%p487) target = $region24
        $region23: #{trans_encoder_forward.1} parent=11 // pred_region
          _
        $region24: #{trans_encoder_forward.1} parent=11 // pred_fallthru
          _
      $region12: #{trans_encoder_forward.1} parent=5 // pred_fallthru
        _
      %p490 = scmp.lt.s32.totalorder %s35, 4
      // Predicated region
      $region25: #{trans_encoder_forward.1} parent=5 // pred_check
        %p491 = pneg %p490
      $region26: #{trans_encoder_forward.1} parent=5 // pred_check_branch
        %493 = sbr.rel (%p491) target = $region28
      $region27: #{trans_encoder_forward.1} parent=5 // pred_region
        // Predicated region
        $region29: #{trans_encoder_forward.1} parent=27 // pred_check
          %p494 = pneg %p135
        $region30: #{trans_encoder_forward.1} parent=27 // pred_check_branch
          %496 = sbr.rel (%p494) target = $region32
        $region31: #{trans_encoder_forward.1} parent=27 // pred_region
          %s497 = sand.u32 %s35, 1
          %s498 = scalar_lea.sflag [#allocation7], %s497
          %s499 = sand.u32 %s125, 1
          %s500 = smul.addr %s499, 192
          %s501 = scalar_lea.vmem [#allocation6], %s500
          %s503 = ssub.s32 3072, 3072
          %504 = vsyncadd %s498, %s503
          %s505 = smul.addr %s43, 48
          %s506 = smul.addr %s505, 64
          %s507 = scalar_lea.hbm %s3, %s506
          %s508 = sshll.u32 %s501, 4
          %s509 = int_to_ptr.vmem [resolvable:$true] %s508
          %514 = dma.hbm_to_vmem [thread:$0]  %s507, 3072, %s509, %s498, 192, 192, 12
        $region32: #{trans_encoder_forward.1} parent=27 // pred_fallthru
          _
        // Predicated region
        $region33: #{trans_encoder_forward.1} parent=27 // pred_check
          %p515 = pneg %p161
        $region34: #{trans_encoder_forward.1} parent=27 // pred_check_branch
          %517 = sbr.rel (%p515) target = $region36
        $region35: #{trans_encoder_forward.1} parent=27 // pred_region
          %p518 = scmp.lt.s32.totalorder %s43, 3
          %s519 = scalar_select %p518, %s43, 3
          %s520 = smul.addr %s519, 3
          %s521 = scalar_lea.vmem %s4, %s520
        $region36: #{trans_encoder_forward.1} parent=27 // pred_fallthru
          _
        // Predicated region
        $region37: #{trans_encoder_forward.1} parent=27 // pred_check
          %p522 = pneg %p187
        $region38: #{trans_encoder_forward.1} parent=27 // pred_check_branch
          %524 = sbr.rel (%p522) target = $region40
        $region39: #{trans_encoder_forward.1} parent=27 // pred_region
          %s525 = sand.u32 %s35, 1
          %s526 = scalar_lea.sflag [#allocation7], %s525
          %s527 = sand.u32 %s177, 1
          %s528 = smul.addr %s527, 64
          %s529 = scalar_lea.vmem [#allocation8], %s528
          %s531 = ssub.s32 1024, 1024
          %532 = vsyncadd %s526, %s531
          %s533 = smul.addr %s43, 16
          %s534 = smul.addr %s533, 64
          %s535 = scalar_lea.hbm %s5, %s534
          %s536 = sshll.u32 %s529, 4
          %s537 = int_to_ptr.vmem [resolvable:$true] %s536
          %542 = dma.hbm_to_vmem [thread:$0]  %s535, 1024, %s537, %s526, 64, 64, 4
        $region40: #{trans_encoder_forward.1} parent=27 // pred_fallthru
          _
        // Predicated region
        $region41: #{trans_encoder_forward.1} parent=27 // pred_check
          %p543 = pneg %p213
        $region42: #{trans_encoder_forward.1} parent=27 // pred_check_branch
          %545 = sbr.rel (%p543) target = $region44
        $region43: #{trans_encoder_forward.1} parent=27 // pred_region
          %s546 = sand.u32 %s35, 1
          %s547 = scalar_lea.sflag [#allocation10], %s546
          %s548 = sand.u32 %s203, 1
          %s549 = scalar_lea.vmem [#allocation9], %s548
          %s551 = ssub.s32 16, 16
          %552 = vsyncadd %s547, %s551
          %s553 = smul.addr %s43, 16
          %s554 = scalar_lea.hbm %s6, %s553
          %s556 = sshll.u32 %s549, 4
          %s557 = int_to_ptr.vmem [resolvable:$true] %s556
          %559 = dma.hbm_to_vmem [thread:$0]  %s554, 16, %s557, %s547
        $region44: #{trans_encoder_forward.1} parent=27 // pred_fallthru
          _
        // Predicated region
        $region45: #{trans_encoder_forward.1} parent=27 // pred_check
          %p560 = pneg %p239
        $region46: #{trans_encoder_forward.1} parent=27 // pred_check_branch
          %562 = sbr.rel (%p560) target = $region48
        $region47: #{trans_encoder_forward.1} parent=27 // pred_region
          %p563 = scmp.lt.s32.totalorder %s43, 3
          %s564 = scalar_select %p563, %s43, 3
          %s565 = scalar_lea.vmem %s7, %s564
        $region48: #{trans_encoder_forward.1} parent=27 // pred_fallthru
          _
        // Predicated region
        $region49: #{trans_encoder_forward.1} parent=27 // pred_check
          %p566 = pneg %p265
        $region50: #{trans_encoder_forward.1} parent=27 // pred_check_branch
          %568 = sbr.rel (%p566) target = $region52
        $region51: #{trans_encoder_forward.1} parent=27 // pred_region
          %p569 = scmp.lt.s32.totalorder %s43, 3
          %s570 = scalar_select %p569, %s43, 3
          %s571 = scalar_lea.vmem %s8, %s570
        $region52: #{trans_encoder_forward.1} parent=27 // pred_fallthru
          _
        // Predicated region
        $region53: #{trans_encoder_forward.1} parent=27 // pred_check
          %p572 = pneg %p291
        $region54: #{trans_encoder_forward.1} parent=27 // pred_check_branch
          %574 = sbr.rel (%p572) target = $region56
        $region55: #{trans_encoder_forward.1} parent=27 // pred_region
          %s575 = sand.u32 %s35, 1
          %s576 = scalar_lea.sflag [#allocation10], %s575
          %s577 = sand.u32 %s281, 1
          %s578 = smul.addr %s577, 64
          %s579 = scalar_lea.vmem [#allocation11], %s578
          %s581 = ssub.s32 1024, 1024
          %582 = vsyncadd %s576, %s581
          %s583 = smul.addr %s43, 16
          %s584 = smul.addr %s583, 64
          %s585 = scalar_lea.hbm %s9, %s584
          %s586 = sshll.u32 %s579, 4
          %s587 = int_to_ptr.vmem [resolvable:$true] %s586
          %592 = dma.hbm_to_vmem [thread:$0]  %s585, 1024, %s587, %s576, 64, 64, 4
        $region56: #{trans_encoder_forward.1} parent=27 // pred_fallthru
          _
        // Predicated region
        $region57: #{trans_encoder_forward.1} parent=27 // pred_check
          %p593 = pneg %p317
        $region58: #{trans_encoder_forward.1} parent=27 // pred_check_branch
          %595 = sbr.rel (%p593) target = $region60
        $region59: #{trans_encoder_forward.1} parent=27 // pred_region
          %s596 = sand.u32 %s35, 1
          %s597 = scalar_lea.sflag [#allocation13], %s596
          %s598 = sand.u32 %s307, 1
          %s599 = scalar_lea.vmem [#allocation12], %s598
          %s601 = ssub.s32 16, 16
          %602 = vsyncadd %s597, %s601
          %s603 = smul.addr %s43, 16
          %s604 = scalar_lea.hbm %s10, %s603
          %s606 = sshll.u32 %s599, 4
          %s607 = int_to_ptr.vmem [resolvable:$true] %s606
          %609 = dma.hbm_to_vmem [thread:$0]  %s604, 16, %s607, %s597
        $region60: #{trans_encoder_forward.1} parent=27 // pred_fallthru
          _
        // Predicated region
        $region61: #{trans_encoder_forward.1} parent=27 // pred_check
          %p610 = pneg %p343
        $region62: #{trans_encoder_forward.1} parent=27 // pred_check_branch
          %612 = sbr.rel (%p610) target = $region64
        $region63: #{trans_encoder_forward.1} parent=27 // pred_region
          %s613 = sand.u32 %s35, 1
          %s614 = scalar_lea.sflag [#allocation13], %s613
          %s615 = sand.u32 %s333, 1
          %s616 = smul.addr %s615, 64
          %s617 = scalar_lea.vmem [#allocation14], %s616
          %s619 = ssub.s32 1024, 1024
          %620 = vsyncadd %s614, %s619
          %s621 = smul.addr %s43, 16
          %s622 = smul.addr %s621, 64
          %s623 = scalar_lea.hbm %s11, %s622
          %s624 = sshll.u32 %s617, 4
          %s625 = int_to_ptr.vmem [resolvable:$true] %s624
          %630 = dma.hbm_to_vmem [thread:$0]  %s623, 1024, %s625, %s614, 64, 64, 4
        $region64: #{trans_encoder_forward.1} parent=27 // pred_fallthru
          _
        // Predicated region
        $region65: #{trans_encoder_forward.1} parent=27 // pred_check
          %p631 = pneg %p369
        $region66: #{trans_encoder_forward.1} parent=27 // pred_check_branch
          %633 = sbr.rel (%p631) target = $region68
        $region67: #{trans_encoder_forward.1} parent=27 // pred_region
          %s634 = sand.u32 %s359, 1
          %s635 = scalar_lea.sflag [#allocation16], %s634
          %s636 = sand.u32 %s359, 1
          %s637 = scalar_lea.vmem [#allocation15], %s636
          %s639 = ssub.s32 16, 16
          %640 = vsyncadd %s635, %s639
          %s641 = smul.addr %s43, 16
          %s642 = scalar_lea.hbm %s12, %s641
          %s644 = sshll.u32 %s637, 4
          %s645 = int_to_ptr.vmem [resolvable:$true] %s644
          %647 = dma.hbm_to_vmem [thread:$0]  %s642, 16, %s645, %s635
        $region68: #{trans_encoder_forward.1} parent=27 // pred_fallthru
          _
        // Predicated region
        $region69: #{trans_encoder_forward.1} parent=27 // pred_check
          %p648 = pneg %p395
        $region70: #{trans_encoder_forward.1} parent=27 // pred_check_branch
          %650 = sbr.rel (%p648) target = $region72
        $region71: #{trans_encoder_forward.1} parent=27 // pred_region
          %p651 = scmp.lt.s32.totalorder %s43, 3
          %s652 = scalar_select %p651, %s43, 3
          %s653 = scalar_lea.vmem %s13, %s652
        $region72: #{trans_encoder_forward.1} parent=27 // pred_fallthru
          _
        // Predicated region
        $region73: #{trans_encoder_forward.1} parent=27 // pred_check
          %p654 = pneg %p421
        $region74: #{trans_encoder_forward.1} parent=27 // pred_check_branch
          %656 = sbr.rel (%p654) target = $region76
        $region75: #{trans_encoder_forward.1} parent=27 // pred_region
          %p657 = scmp.lt.s32.totalorder %s43, 3
          %s658 = scalar_select %p657, %s43, 3
          %s659 = scalar_lea.vmem %s14, %s658
        $region76: #{trans_encoder_forward.1} parent=27 // pred_fallthru
          _
      $region28: #{trans_encoder_forward.1} parent=5 // pred_fallthru
        _
      %p660 = scmp.le.s32.totalorder 1, %s35
      %p661 = scmp.lt.s32.totalorder %s35, 5
      %p662 = pnand %p660, %p661
      %p663 = pneg %p662
      // Predicated region
      $region77: #{trans_encoder_forward.1} parent=5 // pred_check
        _
      $region78: #{trans_encoder_forward.1} parent=5 // pred_check_branch
        %665 = sbr.rel (%p662) target = $region80
      $region79: #{trans_encoder_forward.1} parent=5 // pred_region
        %s666 = ssub.s32 %s35, 1
        // Predicated region
        $region81: #{trans_encoder_forward.1} parent=79 // pred_check
          %p667 = pneg %p73
        $region82: #{trans_encoder_forward.1} parent=79 // pred_check_branch
          %669 = sbr.rel (%p667) target = $region84
        $region83: #{trans_encoder_forward.1} parent=79 // pred_region
          %670 = dma.done [#allocation4], 256
        $region84: #{trans_encoder_forward.1} parent=79 // pred_fallthru
          _
        %s671 = sand.u32 %s40, 1
        %s672 = scalar_lea.sflag [#allocation7], %s671
        %s673 = sand.u32 %s128, 1
        %s674 = smul.addr %s673, 192
        %s675 = scalar_lea.vmem [#allocation6], %s674
        // Predicated region
        $region85: #{trans_encoder_forward.1} parent=79 // pred_check
          %p676 = pneg %p141
        $region86: #{trans_encoder_forward.1} parent=79 // pred_check_branch
          %678 = sbr.rel (%p676) target = $region88
        $region87: #{trans_encoder_forward.1} parent=79 // pred_region
          %679 = dma.done %s672, 3072
        $region88: #{trans_encoder_forward.1} parent=79 // pred_fallthru
          _
        %s680 = sand.u32 %s40, 1
        %s681 = scalar_lea.sflag [#allocation7], %s680
        %s682 = sand.u32 %s180, 1
        %s683 = smul.addr %s682, 64
        %s684 = scalar_lea.vmem [#allocation8], %s683
        // Predicated region
        $region89: #{trans_encoder_forward.1} parent=79 // pred_check
          %p685 = pneg %p193
        $region90: #{trans_encoder_forward.1} parent=79 // pred_check_branch
          %687 = sbr.rel (%p685) target = $region92
        $region91: #{trans_encoder_forward.1} parent=79 // pred_region
          %688 = dma.done %s681, 1024
        $region92: #{trans_encoder_forward.1} parent=79 // pred_fallthru
          _
        %s689 = sand.u32 %s40, 1
        %s690 = scalar_lea.sflag [#allocation10], %s689
        %s691 = sand.u32 %s206, 1
        %s692 = scalar_lea.vmem [#allocation9], %s691
        // Predicated region
        $region93: #{trans_encoder_forward.1} parent=79 // pred_check
          %p693 = pneg %p219
        $region94: #{trans_encoder_forward.1} parent=79 // pred_check_branch
          %695 = sbr.rel (%p693) target = $region96
        $region95: #{trans_encoder_forward.1} parent=79 // pred_region
          %696 = dma.done %s690, 16
        $region96: #{trans_encoder_forward.1} parent=79 // pred_fallthru
          _
        %s697 = sand.u32 %s40, 1
        %s698 = scalar_lea.sflag [#allocation10], %s697
        %s699 = sand.u32 %s284, 1
        %s700 = smul.addr %s699, 64
        %s701 = scalar_lea.vmem [#allocation11], %s700
        // Predicated region
        $region97: #{trans_encoder_forward.1} parent=79 // pred_check
          %p702 = pneg %p297
        $region98: #{trans_encoder_forward.1} parent=79 // pred_check_branch
          %704 = sbr.rel (%p702) target = $region100
        $region99: #{trans_encoder_forward.1} parent=79 // pred_region
          %705 = dma.done %s698, 1024
        $region100: #{trans_encoder_forward.1} parent=79 // pred_fallthru
          _
        %s706 = sand.u32 %s40, 1
        %s707 = scalar_lea.sflag [#allocation13], %s706
        %s708 = sand.u32 %s310, 1
        %s709 = scalar_lea.vmem [#allocation12], %s708
        // Predicated region
        $region101: #{trans_encoder_forward.1} parent=79 // pred_check
          %p710 = pneg %p323
        $region102: #{trans_encoder_forward.1} parent=79 // pred_check_branch
          %712 = sbr.rel (%p710) target = $region104
        $region103: #{trans_encoder_forward.1} parent=79 // pred_region
          %713 = dma.done %s707, 16
        $region104: #{trans_encoder_forward.1} parent=79 // pred_fallthru
          _
        %s714 = sand.u32 %s40, 1
        %s715 = scalar_lea.sflag [#allocation13], %s714
        %s716 = sand.u32 %s336, 1
        %s717 = smul.addr %s716, 64
        %s718 = scalar_lea.vmem [#allocation14], %s717
        // Predicated region
        $region105: #{trans_encoder_forward.1} parent=79 // pred_check
          %p719 = pneg %p349
        $region106: #{trans_encoder_forward.1} parent=79 // pred_check_branch
          %721 = sbr.rel (%p719) target = $region108
        $region107: #{trans_encoder_forward.1} parent=79 // pred_region
          %722 = dma.done %s715, 1024
        $region108: #{trans_encoder_forward.1} parent=79 // pred_fallthru
          _
        %s723 = sand.u32 %s362, 1
        %s724 = scalar_lea.sflag [#allocation16], %s723
        %s725 = sand.u32 %s362, 1
        %s726 = scalar_lea.vmem [#allocation15], %s725
        // Predicated region
        $region109: #{trans_encoder_forward.1} parent=79 // pred_check
          %p727 = pneg %p375
        $region110: #{trans_encoder_forward.1} parent=79 // pred_check_branch
          %729 = sbr.rel (%p727) target = $region112
        $region111: #{trans_encoder_forward.1} parent=79 // pred_region
          %730 = dma.done %s724, 16
        $region112: #{trans_encoder_forward.1} parent=79 // pred_fallthru
          _
        %p731 = pneg %p73
        %p732 = pneg %p70
        %p733 = pneg %p94
        %p734 = pneg %p91
        %p735 = pneg %p115
        %p736 = pneg %p112
        %s737 = sand.u32 %s40, 1
        %s738 = scalar_lea.sflag [#allocation7], %s737
        %s739 = sand.u32 %s128, 1
        %s740 = smul.addr %s739, 192
        %s741 = scalar_lea.vmem [#allocation6], %s740
        %p742 = pneg %p141
        %p743 = pneg %p138
        %p744 = scmp.lt.s32.totalorder %s45, 3
        %s745 = scalar_select %p744, %s45, 3
        %s746 = smul.addr %s745, 3
        %s747 = scalar_lea.vmem %s4, %s746
        %p748 = pneg %p167
        %p749 = pneg %p164
        %s750 = sand.u32 %s40, 1
        %s751 = scalar_lea.sflag [#allocation7], %s750
        %s752 = sand.u32 %s180, 1
        %s753 = smul.addr %s752, 64
        %s754 = scalar_lea.vmem [#allocation8], %s753
        %p755 = pneg %p193
        %p756 = pneg %p190
        %s757 = sand.u32 %s40, 1
        %s758 = scalar_lea.sflag [#allocation10], %s757
        %s759 = sand.u32 %s206, 1
        %s760 = scalar_lea.vmem [#allocation9], %s759
        %p761 = pneg %p219
        %p762 = pneg %p216
        %p763 = scmp.lt.s32.totalorder %s45, 3
        %s764 = scalar_select %p763, %s45, 3
        %s765 = scalar_lea.vmem %s7, %s764
        %p766 = pneg %p245
        %p767 = pneg %p242
        %p768 = scmp.lt.s32.totalorder %s45, 3
        %s769 = scalar_select %p768, %s45, 3
        %s770 = scalar_lea.vmem %s8, %s769
        %p771 = pneg %p271
        %p772 = pneg %p268
        %s773 = sand.u32 %s40, 1
        %s774 = scalar_lea.sflag [#allocation10], %s773
        %s775 = sand.u32 %s284, 1
        %s776 = smul.addr %s775, 64
        %s777 = scalar_lea.vmem [#allocation11], %s776
        %p778 = pneg %p297
        %p779 = pneg %p294
        %s780 = sand.u32 %s40, 1
        %s781 = scalar_lea.sflag [#allocation13], %s780
        %s782 = sand.u32 %s310, 1
        %s783 = scalar_lea.vmem [#allocation12], %s782
        %p784 = pneg %p323
        %p785 = pneg %p320
        %s786 = sand.u32 %s40, 1
        %s787 = scalar_lea.sflag [#allocation13], %s786
        %s788 = sand.u32 %s336, 1
        %s789 = smul.addr %s788, 64
        %s790 = scalar_lea.vmem [#allocation14], %s789
        %p791 = pneg %p349
        %p792 = pneg %p346
        %s793 = sand.u32 %s362, 1
        %s794 = scalar_lea.sflag [#allocation16], %s793
        %s795 = sand.u32 %s362, 1
        %s796 = scalar_lea.vmem [#allocation15], %s795
        %p797 = pneg %p375
        %p798 = pneg %p372
        %p799 = scmp.lt.s32.totalorder %s45, 3
        %s800 = scalar_select %p799, %s45, 3
        %s801 = scalar_lea.vmem %s13, %s800
        %p802 = pneg %p401
        %p803 = pneg %p398
        %p804 = scmp.lt.s32.totalorder %s45, 3
        %s805 = scalar_select %p804, %s45, 3
        %s806 = scalar_lea.vmem %s14, %s805
        %p807 = pneg %p427
        %p808 = pneg %p424
        %p809 = pneg %p453
        %p810 = pneg %p450
        %s811 = smul.u32 2, %s44
        %p812 = scmp.lt.s32.totalorder %s45, 3
        %s813 = scalar_select %p812, %s45, 3
        %s814 = smul.addr %s813, 3
        %s815 = scalar_lea.vmem %s4, %s814
        %p816 = scmp.lt.s32.totalorder %s45, 3
        %s817 = scalar_select %p816, %s45, 3
        %s818 = scalar_lea.vmem %s7, %s817
        %p819 = scmp.lt.s32.totalorder %s45, 3
        %s820 = scalar_select %p819, %s45, 3
        %s821 = scalar_lea.vmem %s8, %s820
        %p822 = scmp.lt.s32.totalorder %s45, 3
        %s823 = scalar_select %p822, %s45, 3
        %s824 = scalar_lea.vmem %s13, %s823
        %p825 = scmp.lt.s32.totalorder %s45, 3
        %s826 = scalar_select %p825, %s45, 3
        %s827 = scalar_lea.vmem %s14, %s826
        %p829 = scmp.eq.s32.totalorder %s45, 0
        // Predicated region
        $region113: #{trans_encoder_forward.1} parent=79 // pred_check
          %p830 = pneg %p829
        $region114: #{trans_encoder_forward.1} parent=79 // pred_check_branch
          %832 = sbr.rel (%p830) target = $region116
        $region115: #{trans_encoder_forward.1} parent=79 // pred_region
          %v833 = vld [vmem:[#allocation3] sm:$0xff]
          %v834 = vld [vmem:[#allocation3 + $0x8] sm:$0xff]
          %v835 = vpack.c.bf16 %v834, %v833
          %v836 = vld [vmem:[%s1] sm:$0xf]
          %v837 = vld [vmem:[%s1 + $0x4] sm:$0xf]
          %v838 = vld [vmem:[%s2] sm:$0x1]
          %v840 = vlaneseq
          %v841 = vshrl.u32 %v840, 7
          %v842 = vsub.s32 0, %v841
          %v843 = vrot.slane %v838, %v842
          %v847 = vunpack.c.l.b16 %v836
          %v848 = vunpack.c.l.b16 %v837
          %v849 = vpack.c.b16 %v848, %v847
          %vm851 = vcmask 130048
          %v853 = vsel %vm851, %v835, 0
          %855 = vmatprep.subr.bf16.mxu0 0
          %856 = vmatpush1.bf16.msra.mxu0 %v849
          %857 = vmatprep.subr.bf16.mxu0 0
          %858 = vmatpush1.bf16.msra.mxu0 0
          %859 = vmatprep.subr.bf16.mxu0 0
          %860 = vmatpush1.bf16.msra.mxu0 0
          %861 = vmatprep.subr.bf16.mxu0 0
          %862 = vmatpush1.bf16.msra.mxu0 0
          %863 = vmatprep.subr.bf16.mxu0 0
          %864 = vmatpush1.bf16.msra.mxu0 0
          %865 = vmatprep.subr.bf16.mxu0 0
          %866 = vmatpush1.bf16.msra.mxu0 0
          %867 = vmatprep.subr.bf16.mxu0 0
          %868 = vmatpush1.bf16.msra.mxu0 0
          %869 = vmatprep.subr.bf16.mxu0 0
          %870 = vmatpush1.bf16.msra.mxu0 0
          %871 = vmatprep.subr.bf16.mxu0 0
          %872 = vmatpush1.bf16.msra.mxu0 0
          %873 = vmatprep.subr.bf16.mxu0 0
          %874 = vmatpush1.bf16.msra.mxu0 0
          %875 = vmatprep.subr.bf16.mxu0 0
          %876 = vmatpush1.bf16.msra.mxu0 0
          %877 = vmatprep.subr.bf16.mxu0 0
          %878 = vmatpush1.bf16.msra.mxu0 0
          %879 = vmatprep.subr.bf16.mxu0 0
          %880 = vmatpush1.bf16.msra.mxu0 0
          %881 = vmatprep.subr.bf16.mxu0 0
          %882 = vmatpush1.bf16.msra.mxu0 0
          %883 = vmatprep.subr.bf16.mxu0 0
          %884 = vmatpush1.bf16.msra.mxu0 0
          %885 = vmatprep.subr.bf16.mxu0 0
          %886 = vmatpush1.bf16.msra.mxu0 0
          %887 = vmatprep.mubr.bf16.mxu0 0
          %888 = vmatmul.mubr.bf16.gmra.mrb[0].mxu0 %v853
          %v889 = vpop.f32.mrb[0].mxu0
          %v890 = vadd.f32 %v843, %v889
          %v891 = vpop.f32.mrb[0].mxu0
          %v892 = vpop.f32.mrb[0].mxu0
          %v893 = vadd.f32 %v843, %v892
          %v894 = vpop.f32.mrb[0].mxu0
          %895 = vdwg.mxu0
          %896 = vst [vmem:[#allocation2] sm:$0xff] %v890
          %897 = vst [vmem:[#allocation2 + $0x8] sm:$0xff] %v893
        $region116: #{trans_encoder_forward.1} parent=79 // pred_fallthru
          _
        %v898 = vld [vmem:[#allocation2] sm:$0xff]
        %v899 = vld [vmem:[#allocation2 + $0x8] sm:$0xff]
        %v900 = vpack.c.bf16 %v899, %v898
        %v901 = vld [vmem:[%s675] sm:$0xff]
        %v902 = vld [vmem:[%s675 + $0x8] sm:$0xf]
        %v903 = vld [vmem:[%s675 + $0xc] sm:$0xff]
        %v904 = vld [vmem:[%s675 + $0x14] sm:$0xf]
        %v905 = vld [vmem:[%s675 + $0x18] sm:$0xff]
        %v906 = vld [vmem:[%s675 + $0x20] sm:$0xf]
        %v907 = vld [vmem:[%s675 + $0x24] sm:$0xff]
        %v908 = vld [vmem:[%s675 + $0x2c] sm:$0xf]
        %v909 = vld [vmem:[%s675 + $0x30] sm:$0xff]
        %v910 = vld [vmem:[%s675 + $0x38] sm:$0xf]
        %v911 = vld [vmem:[%s675 + $0x3c] sm:$0xff]
        %v912 = vld [vmem:[%s675 + $0x44] sm:$0xf]
        %v913 = vld [vmem:[%s675 + $0x48] sm:$0xff]
        %v914 = vld [vmem:[%s675 + $0x50] sm:$0xf]
        %v915 = vld [vmem:[%s675 + $0x54] sm:$0xff]
        %v916 = vld [vmem:[%s675 + $0x5c] sm:$0xf]
        %v917 = vld [vmem:[%s675 + $0x60] sm:$0xff]
        %v918 = vld [vmem:[%s675 + $0x68] sm:$0xf]
        %v919 = vld [vmem:[%s675 + $0x6c] sm:$0xff]
        %v920 = vld [vmem:[%s675 + $0x74] sm:$0xf]
        %v921 = vld [vmem:[%s675 + $0x78] sm:$0xff]
        %v922 = vld [vmem:[%s675 + $0x80] sm:$0xf]
        %v923 = vld [vmem:[%s675 + $0x84] sm:$0xff]
        %v924 = vld [vmem:[%s675 + $0x8c] sm:$0xf]
        %v925 = vld [vmem:[%s675 + $0x90] sm:$0xff]
        %v926 = vld [vmem:[%s675 + $0x98] sm:$0xf]
        %v927 = vld [vmem:[%s675 + $0x9c] sm:$0xff]
        %v928 = vld [vmem:[%s675 + $0xa4] sm:$0xf]
        %v929 = vld [vmem:[%s675 + $0xa8] sm:$0xff]
        %v930 = vld [vmem:[%s675 + $0xb0] sm:$0xf]
        %v931 = vld [vmem:[%s675 + $0xb4] sm:$0xff]
        %v932 = vld [vmem:[%s675 + $0xbc] sm:$0xf]
        %v933 = vld [vmem:[%s815] sm:$0x7]
        %v935 = vlaneseq
        %v936 = vshrl.u32 %v935, 7
        %v937 = vsub.s32 0, %v936
        %v938 = vrot.slane %v933, %v937
        %v939 = vlaneseq
        %v940 = vshrl.u32 %v939, 7
        %v941 = vsub.s32 1, %v940
        %v942 = vrot.slane %v933, %v941
        %v943 = vlaneseq
        %v944 = vshrl.u32 %v943, 7
        %v945 = vsub.s32 2, %v944
        %v946 = vrot.slane %v933, %v945
        %v982 = vunpack.c.l.b16 %v901
        %v983 = vunpack.c.h.b16 %v901
        %v984 = vunpack.c.l.b16 %v902
        %v985 = vunpack.c.l.b16 %v903
        %v986 = vunpack.c.h.b16 %v903
        %v987 = vunpack.c.l.b16 %v904
        %v988 = vunpack.c.l.b16 %v905
        %v989 = vunpack.c.h.b16 %v905
        %v990 = vunpack.c.l.b16 %v906
        %v991 = vunpack.c.l.b16 %v907
        %v992 = vunpack.c.h.b16 %v907
        %v993 = vunpack.c.l.b16 %v908
        %v994 = vunpack.c.l.b16 %v909
        %v995 = vunpack.c.h.b16 %v909
        %v996 = vunpack.c.l.b16 %v910
        %v997 = vunpack.c.l.b16 %v911
        %v998 = vunpack.c.h.b16 %v911
        %v999 = vunpack.c.l.b16 %v912
        %v1000 = vunpack.c.l.b16 %v913
        %v1001 = vunpack.c.h.b16 %v913
        %v1002 = vunpack.c.l.b16 %v914
        %v1003 = vunpack.c.l.b16 %v915
        %v1004 = vunpack.c.h.b16 %v915
        %v1005 = vunpack.c.l.b16 %v916
        %v1006 = vunpack.c.l.b16 %v917
        %v1007 = vunpack.c.h.b16 %v917
        %v1008 = vunpack.c.l.b16 %v918
        %v1009 = vunpack.c.l.b16 %v919
        %v1010 = vunpack.c.h.b16 %v919
        %v1011 = vunpack.c.l.b16 %v920
        %v1012 = vunpack.c.l.b16 %v921
        %v1013 = vunpack.c.h.b16 %v921
        %v1014 = vunpack.c.l.b16 %v922
        %v1015 = vunpack.c.l.b16 %v923
        %v1016 = vunpack.c.h.b16 %v923
        %v1017 = vunpack.c.l.b16 %v924
        %v1018 = vunpack.c.l.b16 %v925
        %v1019 = vunpack.c.h.b16 %v925
        %v1020 = vunpack.c.l.b16 %v926
        %v1021 = vunpack.c.l.b16 %v927
        %v1022 = vunpack.c.h.b16 %v927
        %v1023 = vunpack.c.l.b16 %v928
        %v1024 = vunpack.c.l.b16 %v929
        %v1025 = vunpack.c.h.b16 %v929
        %v1026 = vunpack.c.l.b16 %v930
        %v1027 = vunpack.c.l.b16 %v931
        %v1028 = vunpack.c.h.b16 %v931
        %v1029 = vunpack.c.l.b16 %v932
        %v1030 = vpack.c.b16 %v985, %v982
        %v1031 = vpack.c.b16 %v986, %v983
        %v1032 = vpack.c.b16 %v987, %v984
        %v1033 = vpack.c.b16 %v991, %v988
        %v1034 = vpack.c.b16 %v992, %v989
        %v1035 = vpack.c.b16 %v993, %v990
        %v1036 = vpack.c.b16 %v997, %v994
        %v1037 = vpack.c.b16 %v998, %v995
        %v1038 = vpack.c.b16 %v999, %v996
        %v1039 = vpack.c.b16 %v1003, %v1000
        %v1040 = vpack.c.b16 %v1004, %v1001
        %v1041 = vpack.c.b16 %v1005, %v1002
        %v1042 = vpack.c.b16 %v1009, %v1006
        %v1043 = vpack.c.b16 %v1010, %v1007
        %v1044 = vpack.c.b16 %v1011, %v1008
        %v1045 = vpack.c.b16 %v1015, %v1012
        %v1046 = vpack.c.b16 %v1016, %v1013
        %v1047 = vpack.c.b16 %v1017, %v1014
        %v1048 = vpack.c.b16 %v1021, %v1018
        %v1049 = vpack.c.b16 %v1022, %v1019
        %v1050 = vpack.c.b16 %v1023, %v1020
        %v1051 = vpack.c.b16 %v1027, %v1024
        %v1052 = vpack.c.b16 %v1028, %v1025
        %v1053 = vpack.c.b16 %v1029, %v1026
        %1078 = vmatprep.subr.bf16.mxu0 %v1031
        %1079 = vmatpush1.bf16.msra.mxu0 %v1030
        %1080 = vmatprep.subr.bf16.mxu0 %v1034
        %1081 = vmatpush1.bf16.msra.mxu0 %v1033
        %1082 = vmatprep.subr.bf16.mxu0 %v1037
        %1083 = vmatpush1.bf16.msra.mxu0 %v1036
        %1084 = vmatprep.subr.bf16.mxu0 %v1040
        %1085 = vmatpush1.bf16.msra.mxu0 %v1039
        %1086 = vmatprep.subr.bf16.mxu0 %v1043
        %1087 = vmatpush1.bf16.msra.mxu0 %v1042
        %1088 = vmatprep.subr.bf16.mxu0 %v1046
        %1089 = vmatpush1.bf16.msra.mxu0 %v1045
        %1090 = vmatprep.subr.bf16.mxu0 %v1049
        %1091 = vmatpush1.bf16.msra.mxu0 %v1048
        %1092 = vmatprep.subr.bf16.mxu0 %v1052
        %1093 = vmatpush1.bf16.msra.mxu0 %v1051
        %1094 = vmatprep.subr.bf16.mxu0 0
        %1095 = vmatpush1.bf16.msra.mxu0 0
        %1096 = vmatprep.subr.bf16.mxu0 0
        %1097 = vmatpush1.bf16.msra.mxu0 0
        %1098 = vmatprep.subr.bf16.mxu0 0
        %1099 = vmatpush1.bf16.msra.mxu0 0
        %1100 = vmatprep.subr.bf16.mxu0 0
        %1101 = vmatpush1.bf16.msra.mxu0 0
        %1102 = vmatprep.subr.bf16.mxu0 0
        %1103 = vmatpush1.bf16.msra.mxu0 0
        %1104 = vmatprep.subr.bf16.mxu0 0
        %1105 = vmatpush1.bf16.msra.mxu0 0
        %1106 = vmatprep.subr.bf16.mxu0 0
        %1107 = vmatpush1.bf16.msra.mxu0 0
        %1108 = vmatprep.subr.bf16.mxu0 0
        %1109 = vmatpush1.bf16.msra.mxu0 0
        %1110 = vmatprep.mubr.bf16.mxu0 0
        %1111 = vmatmul.mubr.bf16.gmra.mrb[0].mxu0 %v900
        %v1112 = vpop.f32.mrb[0].mxu0
        %v1113 = vadd.f32 %v938, %v1112
        %v1114 = vpop.f32.mrb[0].mxu0
        %v1115 = vadd.f32 %v942, %v1114
        %v1116 = vpop.f32.mrb[0].mxu0
        %v1117 = vadd.f32 %v938, %v1116
        %v1118 = vpop.f32.mrb[0].mxu0
        %v1119 = vadd.f32 %v942, %v1118
        %1120 = vdwg.mxu0
        %1121 = vmatprep.subr.bf16.mxu0 0
        %1122 = vmatpush1.bf16.msra.mxu0 %v1032
        %1123 = vmatprep.subr.bf16.mxu0 0
        %1124 = vmatpush1.bf16.msra.mxu0 %v1035
        %1125 = vmatprep.subr.bf16.mxu0 0
        %1126 = vmatpush1.bf16.msra.mxu0 %v1038
        %1127 = vmatprep.subr.bf16.mxu0 0
        %1128 = vmatpush1.bf16.msra.mxu0 %v1041
        %1129 = vmatprep.subr.bf16.mxu0 0
        %1130 = vmatpush1.bf16.msra.mxu0 %v1044
        %1131 = vmatprep.subr.bf16.mxu0 0
        %1132 = vmatpush1.bf16.msra.mxu0 %v1047
        %1133 = vmatprep.subr.bf16.mxu0 0
        %1134 = vmatpush1.bf16.msra.mxu0 %v1050
        %1135 = vmatprep.subr.bf16.mxu0 0
        %1136 = vmatpush1.bf16.msra.mxu0 %v1053
        %1137 = vmatprep.subr.bf16.mxu0 0
        %1138 = vmatpush1.bf16.msra.mxu0 0
        %1139 = vmatprep.subr.bf16.mxu0 0
        %1140 = vmatpush1.bf16.msra.mxu0 0
        %1141 = vmatprep.subr.bf16.mxu0 0
        %1142 = vmatpush1.bf16.msra.mxu0 0
        %1143 = vmatprep.subr.bf16.mxu0 0
        %1144 = vmatpush1.bf16.msra.mxu0 0
        %1145 = vmatprep.subr.bf16.mxu0 0
        %1146 = vmatpush1.bf16.msra.mxu0 0
        %1147 = vmatprep.subr.bf16.mxu0 0
        %1148 = vmatpush1.bf16.msra.mxu0 0
        %1149 = vmatprep.subr.bf16.mxu0 0
        %1150 = vmatpush1.bf16.msra.mxu0 0
        %1151 = vmatprep.subr.bf16.mxu0 0
        %1152 = vmatpush1.bf16.msra.mxu0 0
        %1153 = vmatprep.mubr.bf16.mxu0 0
        %1154 = vmatmul.mubr.bf16.gmra.mrb[0].mxu0 %v900
        %v1155 = vpop.f32.mrb[0].mxu0
        %v1156 = vadd.f32 %v946, %v1155
        %v1157 = vpop.f32.mrb[0].mxu0
        %v1158 = vpop.f32.mrb[0].mxu0
        %v1159 = vadd.f32 %v946, %v1158
        %v1160 = vpop.f32.mrb[0].mxu0
        %1161 = vdwg.mxu0
        %v1162 = vpack.c.bf16 %v1113, %v1113
        %v1163 = vpack.c.bf16 %v1117, %v1117
        %v1164 = vpack.c.bf16 %v1115, %v1115
        %v1165 = vpack.c.bf16 %v1119, %v1119
        %v1166 = vpack.c.bf16 %v1156, %v1156
        %v1167 = vpack.c.bf16 %v1159, %v1159
        %1168 = vmatprep.subr.bf16.mxu0 0
        %1169 = vmatpush1.bf16.xpose.msra.mxu0 %v1164
        %1170 = vmatprep.subr.bf16.mxu0 0
        %1171 = vmatpush1.bf16.xpose.msra.mxu0 0
        %1172 = vmatprep.subr.bf16.mxu0 0
        %1173 = vmatpush1.bf16.xpose.msra.mxu0 0
        %1174 = vmatprep.subr.bf16.mxu0 0
        %1175 = vmatpush1.bf16.xpose.msra.mxu0 0
        %1176 = vmatprep.subr.bf16.mxu0 0
        %1177 = vmatpush1.bf16.xpose.msra.mxu0 0
        %1178 = vmatprep.subr.bf16.mxu0 0
        %1179 = vmatpush1.bf16.xpose.msra.mxu0 0
        %1180 = vmatprep.subr.bf16.mxu0 0
        %1181 = vmatpush1.bf16.xpose.msra.mxu0 0
        %1182 = vmatprep.subr.bf16.mxu0 0
        %1183 = vmatpush1.bf16.xpose.msra.mxu0 0
        %1184 = vmatprep.subr.bf16.mxu0 0
        %1185 = vmatpush1.bf16.xpose.msra.mxu0 0
        %1186 = vmatprep.subr.bf16.mxu0 0
        %1187 = vmatpush1.bf16.xpose.msra.mxu0 0
        %1188 = vmatprep.subr.bf16.mxu0 0
        %1189 = vmatpush1.bf16.xpose.msra.mxu0 0
        %1190 = vmatprep.subr.bf16.mxu0 0
        %1191 = vmatpush1.bf16.xpose.msra.mxu0 0
        %1192 = vmatprep.subr.bf16.mxu0 0
        %1193 = vmatpush1.bf16.xpose.msra.mxu0 0
        %1194 = vmatprep.subr.bf16.mxu0 0
        %1195 = vmatpush1.bf16.xpose.msra.mxu0 0
        %1196 = vmatprep.subr.bf16.mxu0 0
        %1197 = vmatpush1.bf16.xpose.msra.mxu0 0
        %1198 = vmatprep.subr.bf16.mxu0 0
        %1199 = vmatpush1.bf16.xpose.msra.mxu0 0
        %1200 = vmatprep.mubr.bf16.mxu0 0
        %1201 = vmatmul.mubr.bf16.gmra.mrb[0].mxu0 %v1162
        %v1202 = vpop.f32.mrb[0].mxu0
        %v1203 = vadd.f32 0.0, %v1202
        %v1204 = vpop.f32.mrb[0].mxu0
        %v1205 = vpop.f32.mrb[0].mxu0
        %v1206 = vpop.f32.mrb[0].mxu0
        %1207 = vdwg.mxu0
        %1208 = vmatprep.subr.bf16.mxu0 0
        %1209 = vmatpush1.bf16.xpose.msra.mxu0 %v1165
        %1210 = vmatprep.subr.bf16.mxu0 0
        %1211 = vmatpush1.bf16.xpose.msra.mxu0 0
        %1212 = vmatprep.subr.bf16.mxu0 0
        %1213 = vmatpush1.bf16.xpose.msra.mxu0 0
        %1214 = vmatprep.subr.bf16.mxu0 0
        %1215 = vmatpush1.bf16.xpose.msra.mxu0 0
        %1216 = vmatprep.subr.bf16.mxu0 0
        %1217 = vmatpush1.bf16.xpose.msra.mxu0 0
        %1218 = vmatprep.subr.bf16.mxu0 0
        %1219 = vmatpush1.bf16.xpose.msra.mxu0 0
        %1220 = vmatprep.subr.bf16.mxu0 0
        %1221 = vmatpush1.bf16.xpose.msra.mxu0 0
        %1222 = vmatprep.subr.bf16.mxu0 0
        %1223 = vmatpush1.bf16.xpose.msra.mxu0 0
        %1224 = vmatprep.subr.bf16.mxu0 0
        %1225 = vmatpush1.bf16.xpose.msra.mxu0 0
        %1226 = vmatprep.subr.bf16.mxu0 0
        %1227 = vmatpush1.bf16.xpose.msra.mxu0 0
        %1228 = vmatprep.subr.bf16.mxu0 0
        %1229 = vmatpush1.bf16.xpose.msra.mxu0 0
        %1230 = vmatprep.subr.bf16.mxu0 0
        %1231 = vmatpush1.bf16.xpose.msra.mxu0 0
        %1232 = vmatprep.subr.bf16.mxu0 0
        %1233 = vmatpush1.bf16.xpose.msra.mxu0 0
        %1234 = vmatprep.subr.bf16.mxu0 0
        %1235 = vmatpush1.bf16.xpose.msra.mxu0 0
        %1236 = vmatprep.subr.bf16.mxu0 0
        %1237 = vmatpush1.bf16.xpose.msra.mxu0 0
        %1238 = vmatprep.subr.bf16.mxu0 0
        %1239 = vmatpush1.bf16.xpose.msra.mxu0 0
        %1240 = vmatprep.mubr.bf16.mxu0 0
        %1241 = vmatmul.mubr.bf16.gmra.mrb[0].mxu0 %v1163
        %v1242 = vpop.f32.mrb[0].mxu0
        %v1243 = vadd.f32 0.0, %v1242
        %v1244 = vpop.f32.mrb[0].mxu0
        %v1245 = vpop.f32.mrb[0].mxu0
        %v1246 = vpop.f32.mrb[0].mxu0
        %1247 = vdwg.mxu0
        %vm1248 = vcmask 64512
        %v1249 = vsel %vm1248, %v1203, -inf
        %1250 = vmax.xlane.f32.xlu0 %v1249
        %v1251 = vpop.xlane.xlu0 %1250
        %v1252 = vsel %vm1248, %v1243, -inf
        %1253 = vmax.xlane.f32.xlu0 %v1252
        %v1254 = vpop.xlane.xlu0 %1253
        %v1255 = vsub.f32 %v1203, %v1251
        %v1256 = vsub.f32 %v1243, %v1254
        %v1257 = vmul.f32 %v1255, 1.442695
        %v1258 = vpow.pop %v1257
        %v1259 = vmul.f32 %v1256, 1.442695
        %v1260 = vpow.pop %v1259
        %v1261 = vsel %vm1248, %v1258, 0.0
        %1262 = vadd.xlane.f32.xlu0 %v1261
        %v1263 = vpop.xlane.xlu0 %1262
        %v1264 = vsel %vm1248, %v1260, 0.0
        %1265 = vadd.xlane.f32.xlu0 %v1264
        %v1266 = vpop.xlane.xlu0 %1265
        %v1267 = vrcp.pop %v1263
        %v1268 = vrcp.pop %v1266
        %v1269 = vmul.f32 %v1258, %v1267
        %v1270 = vmul.f32 %v1260, %v1268
        %v1271 = vpack.c.bf16 %v1269, %v1269
        %v1272 = vpack.c.bf16 %v1270, %v1270
        %v1274 = vsel %vm1248, %v1271, 0
        %vm1276 = vcmask 1043456
        %v1278 = vsel %vm1276, %v1166, 0
        %1280 = vmatprep.subr.bf16.mxu0 0
        %1281 = vmatpush1.bf16.msra.mxu0 %v1278
        %1282 = vmatprep.subr.bf16.mxu0 0
        %1283 = vmatpush1.bf16.msra.mxu0 0
        %1284 = vmatprep.subr.bf16.mxu0 0
        %1285 = vmatpush1.bf16.msra.mxu0 0
        %1286 = vmatprep.subr.bf16.mxu0 0
        %1287 = vmatpush1.bf16.msra.mxu0 0
        %1288 = vmatprep.subr.bf16.mxu0 0
        %1289 = vmatpush1.bf16.msra.mxu0 0
        %1290 = vmatprep.subr.bf16.mxu0 0
        %1291 = vmatpush1.bf16.msra.mxu0 0
        %1292 = vmatprep.subr.bf16.mxu0 0
        %1293 = vmatpush1.bf16.msra.mxu0 0
        %1294 = vmatprep.subr.bf16.mxu0 0
        %1295 = vmatpush1.bf16.msra.mxu0 0
        %1296 = vmatprep.subr.bf16.mxu0 0
        %1297 = vmatpush1.bf16.msra.mxu0 0
        %1298 = vmatprep.subr.bf16.mxu0 0
        %1299 = vmatpush1.bf16.msra.mxu0 0
        %1300 = vmatprep.subr.bf16.mxu0 0
        %1301 = vmatpush1.bf16.msra.mxu0 0
        %1302 = vmatprep.subr.bf16.mxu0 0
        %1303 = vmatpush1.bf16.msra.mxu0 0
        %1304 = vmatprep.subr.bf16.mxu0 0
        %1305 = vmatpush1.bf16.msra.mxu0 0
        %1306 = vmatprep.subr.bf16.mxu0 0
        %1307 = vmatpush1.bf16.msra.mxu0 0
        %1308 = vmatprep.subr.bf16.mxu0 0
        %1309 = vmatpush1.bf16.msra.mxu0 0
        %1310 = vmatprep.subr.bf16.mxu0 0
        %1311 = vmatpush1.bf16.msra.mxu0 0
        %1312 = vmatprep.mubr.bf16.mxu0 0
        %1313 = vmatmul.mubr.bf16.gmra.mrb[0].mxu0 %v1274
        %v1314 = vpop.f32.mrb[0].mxu0
        %v1315 = vadd.f32 0.0, %v1314
        %v1316 = vpop.f32.mrb[0].mxu0
        %v1317 = vpop.f32.mrb[0].mxu0
        %v1318 = vpop.f32.mrb[0].mxu0
        %1319 = vdwg.mxu0
        %v1321 = vsel %vm1248, %v1272, 0
        %v1324 = vsel %vm1276, %v1167, 0
        %1326 = vmatprep.subr.bf16.mxu0 0
        %1327 = vmatpush1.bf16.msra.mxu0 %v1324
        %1328 = vmatprep.subr.bf16.mxu0 0
        %1329 = vmatpush1.bf16.msra.mxu0 0
        %1330 = vmatprep.subr.bf16.mxu0 0
        %1331 = vmatpush1.bf16.msra.mxu0 0
        %1332 = vmatprep.subr.bf16.mxu0 0
        %1333 = vmatpush1.bf16.msra.mxu0 0
        %1334 = vmatprep.subr.bf16.mxu0 0
        %1335 = vmatpush1.bf16.msra.mxu0 0
        %1336 = vmatprep.subr.bf16.mxu0 0
        %1337 = vmatpush1.bf16.msra.mxu0 0
        %1338 = vmatprep.subr.bf16.mxu0 0
        %1339 = vmatpush1.bf16.msra.mxu0 0
        %1340 = vmatprep.subr.bf16.mxu0 0
        %1341 = vmatpush1.bf16.msra.mxu0 0
        %1342 = vmatprep.subr.bf16.mxu0 0
        %1343 = vmatpush1.bf16.msra.mxu0 0
        %1344 = vmatprep.subr.bf16.mxu0 0
        %1345 = vmatpush1.bf16.msra.mxu0 0
        %1346 = vmatprep.subr.bf16.mxu0 0
        %1347 = vmatpush1.bf16.msra.mxu0 0
        %1348 = vmatprep.subr.bf16.mxu0 0
        %1349 = vmatpush1.bf16.msra.mxu0 0
        %1350 = vmatprep.subr.bf16.mxu0 0
        %1351 = vmatpush1.bf16.msra.mxu0 0
        %1352 = vmatprep.subr.bf16.mxu0 0
        %1353 = vmatpush1.bf16.msra.mxu0 0
        %1354 = vmatprep.subr.bf16.mxu0 0
        %1355 = vmatpush1.bf16.msra.mxu0 0
        %1356 = vmatprep.subr.bf16.mxu0 0
        %1357 = vmatpush1.bf16.msra.mxu0 0
        %1358 = vmatprep.mubr.bf16.mxu0 0
        %1359 = vmatmul.mubr.bf16.gmra.mrb[0].mxu0 %v1321
        %v1360 = vpop.f32.mrb[0].mxu0
        %v1361 = vadd.f32 0.0, %v1360
        %v1362 = vpop.f32.mrb[0].mxu0
        %v1363 = vpop.f32.mrb[0].mxu0
        %v1364 = vpop.f32.mrb[0].mxu0
        %1365 = vdwg.mxu0
        %v1366 = vpack.c.bf16 %v1361, %v1315
        %v1367 = vld [vmem:[%s684] sm:$0xf]
        %v1368 = vld [vmem:[%s684 + $0x4] sm:$0xf]
        %v1369 = vld [vmem:[%s684 + $0x8] sm:$0xf]
        %v1370 = vld [vmem:[%s684 + $0xc] sm:$0xf]
        %v1371 = vld [vmem:[%s684 + $0x10] sm:$0xf]
        %v1372 = vld [vmem:[%s684 + $0x14] sm:$0xf]
        %v1373 = vld [vmem:[%s684 + $0x18] sm:$0xf]
        %v1374 = vld [vmem:[%s684 + $0x1c] sm:$0xf]
        %v1375 = vld [vmem:[%s684 + $0x20] sm:$0xf]
        %v1376 = vld [vmem:[%s684 + $0x24] sm:$0xf]
        %v1377 = vld [vmem:[%s684 + $0x28] sm:$0xf]
        %v1378 = vld [vmem:[%s684 + $0x2c] sm:$0xf]
        %v1379 = vld [vmem:[%s684 + $0x30] sm:$0xf]
        %v1380 = vld [vmem:[%s684 + $0x34] sm:$0xf]
        %v1381 = vld [vmem:[%s684 + $0x38] sm:$0xf]
        %v1382 = vld [vmem:[%s684 + $0x3c] sm:$0xf]
        %v1383 = vld [vmem:[%s692] sm:$0x1]
        %v1385 = vlaneseq
        %v1386 = vshrl.u32 %v1385, 7
        %v1387 = vsub.s32 0, %v1386
        %v1388 = vrot.slane %v1383, %v1387
        %v1406 = vunpack.c.l.b16 %v1367
        %v1407 = vunpack.c.l.b16 %v1368
        %v1408 = vunpack.c.l.b16 %v1369
        %v1409 = vunpack.c.l.b16 %v1370
        %v1410 = vunpack.c.l.b16 %v1371
        %v1411 = vunpack.c.l.b16 %v1372
        %v1412 = vunpack.c.l.b16 %v1373
        %v1413 = vunpack.c.l.b16 %v1374
        %v1414 = vunpack.c.l.b16 %v1375
        %v1415 = vunpack.c.l.b16 %v1376
        %v1416 = vunpack.c.l.b16 %v1377
        %v1417 = vunpack.c.l.b16 %v1378
        %v1418 = vunpack.c.l.b16 %v1379
        %v1419 = vunpack.c.l.b16 %v1380
        %v1420 = vunpack.c.l.b16 %v1381
        %v1421 = vunpack.c.l.b16 %v1382
        %v1422 = vpack.c.b16 %v1407, %v1406
        %v1423 = vpack.c.b16 %v1409, %v1408
        %v1424 = vpack.c.b16 %v1411, %v1410
        %v1425 = vpack.c.b16 %v1413, %v1412
        %v1426 = vpack.c.b16 %v1415, %v1414
        %v1427 = vpack.c.b16 %v1417, %v1416
        %v1428 = vpack.c.b16 %v1419, %v1418
        %v1429 = vpack.c.b16 %v1421, %v1420
        %1438 = vmatprep.subr.bf16.mxu0 0
        %1439 = vmatpush1.bf16.msra.mxu0 %v1422
        %1440 = vmatprep.subr.bf16.mxu0 0
        %1441 = vmatpush1.bf16.msra.mxu0 %v1423
        %1442 = vmatprep.subr.bf16.mxu0 0
        %1443 = vmatpush1.bf16.msra.mxu0 %v1424
        %1444 = vmatprep.subr.bf16.mxu0 0
        %1445 = vmatpush1.bf16.msra.mxu0 %v1425
        %1446 = vmatprep.subr.bf16.mxu0 0
        %1447 = vmatpush1.bf16.msra.mxu0 %v1426
        %1448 = vmatprep.subr.bf16.mxu0 0
        %1449 = vmatpush1.bf16.msra.mxu0 %v1427
        %1450 = vmatprep.subr.bf16.mxu0 0
        %1451 = vmatpush1.bf16.msra.mxu0 %v1428
        %1452 = vmatprep.subr.bf16.mxu0 0
        %1453 = vmatpush1.bf16.msra.mxu0 %v1429
        %1454 = vmatprep.subr.bf16.mxu0 0
        %1455 = vmatpush1.bf16.msra.mxu0 0
        %1456 = vmatprep.subr.bf16.mxu0 0
        %1457 = vmatpush1.bf16.msra.mxu0 0
        %1458 = vmatprep.subr.bf16.mxu0 0
        %1459 = vmatpush1.bf16.msra.mxu0 0
        %1460 = vmatprep.subr.bf16.mxu0 0
        %1461 = vmatpush1.bf16.msra.mxu0 0
        %1462 = vmatprep.subr.bf16.mxu0 0
        %1463 = vmatpush1.bf16.msra.mxu0 0
        %1464 = vmatprep.subr.bf16.mxu0 0
        %1465 = vmatpush1.bf16.msra.mxu0 0
        %1466 = vmatprep.subr.bf16.mxu0 0
        %1467 = vmatpush1.bf16.msra.mxu0 0
        %1468 = vmatprep.subr.bf16.mxu0 0
        %1469 = vmatpush1.bf16.msra.mxu0 0
        %1470 = vmatprep.mubr.bf16.mxu0 0
        %1471 = vmatmul.mubr.bf16.gmra.mrb[0].mxu0 %v1366
        %v1472 = vpop.f32.mrb[0].mxu0
        %v1473 = vadd.f32 %v1388, %v1472
        %v1474 = vpop.f32.mrb[0].mxu0
        %v1475 = vpop.f32.mrb[0].mxu0
        %v1476 = vadd.f32 %v1388, %v1475
        %v1477 = vpop.f32.mrb[0].mxu0
        %1478 = vdwg.mxu0
        %v1479 = vadd.f32 %v898, %v1473
        %v1480 = vadd.f32 %v899, %v1476
        %v1481 = vld [vmem:[%s818] sm:$0x1]
        %v1482 = vld [vmem:[%s821] sm:$0x1]
        %1483 = vadd.xlane.f32.xlu0 %v1479
        %v1484 = vpop.xlane.xlu0 %1483
        %1485 = vadd.xlane.f32.xlu0 %v1480
        %v1486 = vpop.xlane.xlu0 %1485
        %v1487 = vmul.f32 %v1484, 0.03125
        %v1488 = vmul.f32 %v1486, 0.03125
        %v1489 = vmul.f32 %v1479, %v1479
        %v1490 = vmul.f32 %v1480, %v1480
        %1491 = vadd.xlane.f32.xlu0 %v1489
        %v1492 = vpop.xlane.xlu0 %1491
        %1493 = vadd.xlane.f32.xlu0 %v1490
        %v1494 = vpop.xlane.xlu0 %1493
        %v1495 = vmul.f32 %v1492, 0.03125
        %v1496 = vmul.f32 %v1494, 0.03125
        %v1497 = vmul.f32 %v1487, %v1487
        %v1498 = vmul.f32 %v1488, %v1488
        %v1499 = vsub.f32 %v1495, %v1497
        %v1500 = vsub.f32 %v1496, %v1498
        %v1501 = vmax.f32 %v1499, 0.0
        %v1502 = vmax.f32 %v1500, 0.0
        %v1503 = vsub.f32 %v1479, %v1487
        %v1504 = vsub.f32 %v1480, %v1488
        %v1505 = vadd.f32 %v1501, 1e-05
        %v1506 = vadd.f32 %v1502, 1e-05
        %v1507 = vrsqrt.pop %v1505
        %v1508 = vrsqrt.pop %v1506
        %v1509 = vmul.f32 %v1503, %v1507
        %v1510 = vmul.f32 %v1504, %v1508
        %v1512 = vlaneseq
        %v1513 = vshrl.u32 %v1512, 7
        %v1514 = vsub.s32 0, %v1513
        %v1515 = vrot.slane %v1481, %v1514
        %v1517 = vmul.f32 %v1509, %v1515
        %v1518 = vmul.f32 %v1510, %v1515
        %v1520 = vlaneseq
        %v1521 = vshrl.u32 %v1520, 7
        %v1522 = vsub.s32 0, %v1521
        %v1523 = vrot.slane %v1482, %v1522
        %v1525 = vadd.f32 %v1517, %v1523
        %v1526 = vadd.f32 %v1518, %v1523
        %v1527 = vpack.c.bf16 %v1526, %v1525
        %v1528 = vld [vmem:[%s701] sm:$0xf]
        %v1529 = vld [vmem:[%s701 + $0x4] sm:$0xf]
        %v1530 = vld [vmem:[%s701 + $0x8] sm:$0xf]
        %v1531 = vld [vmem:[%s701 + $0xc] sm:$0xf]
        %v1532 = vld [vmem:[%s701 + $0x10] sm:$0xf]
        %v1533 = vld [vmem:[%s701 + $0x14] sm:$0xf]
        %v1534 = vld [vmem:[%s701 + $0x18] sm:$0xf]
        %v1535 = vld [vmem:[%s701 + $0x1c] sm:$0xf]
        %v1536 = vld [vmem:[%s701 + $0x20] sm:$0xf]
        %v1537 = vld [vmem:[%s701 + $0x24] sm:$0xf]
        %v1538 = vld [vmem:[%s701 + $0x28] sm:$0xf]
        %v1539 = vld [vmem:[%s701 + $0x2c] sm:$0xf]
        %v1540 = vld [vmem:[%s701 + $0x30] sm:$0xf]
        %v1541 = vld [vmem:[%s701 + $0x34] sm:$0xf]
        %v1542 = vld [vmem:[%s701 + $0x38] sm:$0xf]
        %v1543 = vld [vmem:[%s701 + $0x3c] sm:$0xf]
        %v1544 = vld [vmem:[%s709] sm:$0x1]
        %v1546 = vlaneseq
        %v1547 = vshrl.u32 %v1546, 7
        %v1548 = vsub.s32 0, %v1547
        %v1549 = vrot.slane %v1544, %v1548
        %v1567 = vunpack.c.l.b16 %v1528
        %v1568 = vunpack.c.l.b16 %v1529
        %v1569 = vunpack.c.l.b16 %v1530
        %v1570 = vunpack.c.l.b16 %v1531
        %v1571 = vunpack.c.l.b16 %v1532
        %v1572 = vunpack.c.l.b16 %v1533
        %v1573 = vunpack.c.l.b16 %v1534
        %v1574 = vunpack.c.l.b16 %v1535
        %v1575 = vunpack.c.l.b16 %v1536
        %v1576 = vunpack.c.l.b16 %v1537
        %v1577 = vunpack.c.l.b16 %v1538
        %v1578 = vunpack.c.l.b16 %v1539
        %v1579 = vunpack.c.l.b16 %v1540
        %v1580 = vunpack.c.l.b16 %v1541
        %v1581 = vunpack.c.l.b16 %v1542
        %v1582 = vunpack.c.l.b16 %v1543
        %v1583 = vpack.c.b16 %v1568, %v1567
        %v1584 = vpack.c.b16 %v1570, %v1569
        %v1585 = vpack.c.b16 %v1572, %v1571
        %v1586 = vpack.c.b16 %v1574, %v1573
        %v1587 = vpack.c.b16 %v1576, %v1575
        %v1588 = vpack.c.b16 %v1578, %v1577
        %v1589 = vpack.c.b16 %v1580, %v1579
        %v1590 = vpack.c.b16 %v1582, %v1581
        %1599 = vmatprep.subr.bf16.mxu0 0
        %1600 = vmatpush1.bf16.msra.mxu0 %v1583
        %1601 = vmatprep.subr.bf16.mxu0 0
        %1602 = vmatpush1.bf16.msra.mxu0 %v1584
        %1603 = vmatprep.subr.bf16.mxu0 0
        %1604 = vmatpush1.bf16.msra.mxu0 %v1585
        %1605 = vmatprep.subr.bf16.mxu0 0
        %1606 = vmatpush1.bf16.msra.mxu0 %v1586
        %1607 = vmatprep.subr.bf16.mxu0 0
        %1608 = vmatpush1.bf16.msra.mxu0 %v1587
        %1609 = vmatprep.subr.bf16.mxu0 0
        %1610 = vmatpush1.bf16.msra.mxu0 %v1588
        %1611 = vmatprep.subr.bf16.mxu0 0
        %1612 = vmatpush1.bf16.msra.mxu0 %v1589
        %1613 = vmatprep.subr.bf16.mxu0 0
        %1614 = vmatpush1.bf16.msra.mxu0 %v1590
        %1615 = vmatprep.subr.bf16.mxu0 0
        %1616 = vmatpush1.bf16.msra.mxu0 0
        %1617 = vmatprep.subr.bf16.mxu0 0
        %1618 = vmatpush1.bf16.msra.mxu0 0
        %1619 = vmatprep.subr.bf16.mxu0 0
        %1620 = vmatpush1.bf16.msra.mxu0 0
        %1621 = vmatprep.subr.bf16.mxu0 0
        %1622 = vmatpush1.bf16.msra.mxu0 0
        %1623 = vmatprep.subr.bf16.mxu0 0
        %1624 = vmatpush1.bf16.msra.mxu0 0
        %1625 = vmatprep.subr.bf16.mxu0 0
        %1626 = vmatpush1.bf16.msra.mxu0 0
        %1627 = vmatprep.subr.bf16.mxu0 0
        %1628 = vmatpush1.bf16.msra.mxu0 0
        %1629 = vmatprep.subr.bf16.mxu0 0
        %1630 = vmatpush1.bf16.msra.mxu0 0
        %1631 = vmatprep.mubr.bf16.mxu0 0
        %1632 = vmatmul.mubr.bf16.gmra.mrb[0].mxu0 %v1527
        %v1633 = vpop.f32.mrb[0].mxu0
        %v1634 = vadd.f32 %v1549, %v1633
        %v1635 = vpop.f32.mrb[0].mxu0
        %v1636 = vpop.f32.mrb[0].mxu0
        %v1637 = vadd.f32 %v1549, %v1636
        %v1638 = vpop.f32.mrb[0].mxu0
        %1639 = vdwg.mxu0
        %v1640 = vmax.f32 %v1634, 0.0
        %v1641 = vmax.f32 %v1637, 0.0
        %v1642 = vpack.c.bf16 %v1641, %v1640
        %v1643 = vld [vmem:[%s718] sm:$0xf]
        %v1644 = vld [vmem:[%s718 + $0x4] sm:$0xf]
        %v1645 = vld [vmem:[%s718 + $0x8] sm:$0xf]
        %v1646 = vld [vmem:[%s718 + $0xc] sm:$0xf]
        %v1647 = vld [vmem:[%s718 + $0x10] sm:$0xf]
        %v1648 = vld [vmem:[%s718 + $0x14] sm:$0xf]
        %v1649 = vld [vmem:[%s718 + $0x18] sm:$0xf]
        %v1650 = vld [vmem:[%s718 + $0x1c] sm:$0xf]
        %v1651 = vld [vmem:[%s718 + $0x20] sm:$0xf]
        %v1652 = vld [vmem:[%s718 + $0x24] sm:$0xf]
        %v1653 = vld [vmem:[%s718 + $0x28] sm:$0xf]
        %v1654 = vld [vmem:[%s718 + $0x2c] sm:$0xf]
        %v1655 = vld [vmem:[%s718 + $0x30] sm:$0xf]
        %v1656 = vld [vmem:[%s718 + $0x34] sm:$0xf]
        %v1657 = vld [vmem:[%s718 + $0x38] sm:$0xf]
        %v1658 = vld [vmem:[%s718 + $0x3c] sm:$0xf]
        %v1659 = vld [vmem:[%s726] sm:$0x1]
        %v1661 = vlaneseq
        %v1662 = vshrl.u32 %v1661, 7
        %v1663 = vsub.s32 0, %v1662
        %v1664 = vrot.slane %v1659, %v1663
        %v1682 = vunpack.c.l.b16 %v1643
        %v1683 = vunpack.c.l.b16 %v1644
        %v1684 = vunpack.c.l.b16 %v1645
        %v1685 = vunpack.c.l.b16 %v1646
        %v1686 = vunpack.c.l.b16 %v1647
        %v1687 = vunpack.c.l.b16 %v1648
        %v1688 = vunpack.c.l.b16 %v1649
        %v1689 = vunpack.c.l.b16 %v1650
        %v1690 = vunpack.c.l.b16 %v1651
        %v1691 = vunpack.c.l.b16 %v1652
        %v1692 = vunpack.c.l.b16 %v1653
        %v1693 = vunpack.c.l.b16 %v1654
        %v1694 = vunpack.c.l.b16 %v1655
        %v1695 = vunpack.c.l.b16 %v1656
        %v1696 = vunpack.c.l.b16 %v1657
        %v1697 = vunpack.c.l.b16 %v1658
        %v1698 = vpack.c.b16 %v1683, %v1682
        %v1699 = vpack.c.b16 %v1685, %v1684
        %v1700 = vpack.c.b16 %v1687, %v1686
        %v1701 = vpack.c.b16 %v1689, %v1688
        %v1702 = vpack.c.b16 %v1691, %v1690
        %v1703 = vpack.c.b16 %v1693, %v1692
        %v1704 = vpack.c.b16 %v1695, %v1694
        %v1705 = vpack.c.b16 %v1697, %v1696
        %1714 = vmatprep.subr.bf16.mxu0 0
        %1715 = vmatpush1.bf16.msra.mxu0 %v1698
        %1716 = vmatprep.subr.bf16.mxu0 0
        %1717 = vmatpush1.bf16.msra.mxu0 %v1699
        %1718 = vmatprep.subr.bf16.mxu0 0
        %1719 = vmatpush1.bf16.msra.mxu0 %v1700
        %1720 = vmatprep.subr.bf16.mxu0 0
        %1721 = vmatpush1.bf16.msra.mxu0 %v1701
        %1722 = vmatprep.subr.bf16.mxu0 0
        %1723 = vmatpush1.bf16.msra.mxu0 %v1702
        %1724 = vmatprep.subr.bf16.mxu0 0
        %1725 = vmatpush1.bf16.msra.mxu0 %v1703
        %1726 = vmatprep.subr.bf16.mxu0 0
        %1727 = vmatpush1.bf16.msra.mxu0 %v1704
        %1728 = vmatprep.subr.bf16.mxu0 0
        %1729 = vmatpush1.bf16.msra.mxu0 %v1705
        %1730 = vmatprep.subr.bf16.mxu0 0
        %1731 = vmatpush1.bf16.msra.mxu0 0
        %1732 = vmatprep.subr.bf16.mxu0 0
        %1733 = vmatpush1.bf16.msra.mxu0 0
        %1734 = vmatprep.subr.bf16.mxu0 0
        %1735 = vmatpush1.bf16.msra.mxu0 0
        %1736 = vmatprep.subr.bf16.mxu0 0
        %1737 = vmatpush1.bf16.msra.mxu0 0
        %1738 = vmatprep.subr.bf16.mxu0 0
        %1739 = vmatpush1.bf16.msra.mxu0 0
        %1740 = vmatprep.subr.bf16.mxu0 0
        %1741 = vmatpush1.bf16.msra.mxu0 0
        %1742 = vmatprep.subr.bf16.mxu0 0
        %1743 = vmatpush1.bf16.msra.mxu0 0
        %1744 = vmatprep.subr.bf16.mxu0 0
        %1745 = vmatpush1.bf16.msra.mxu0 0
        %1746 = vmatprep.mubr.bf16.mxu0 0
        %1747 = vmatmul.mubr.bf16.gmra.mrb[0].mxu0 %v1642
        %v1748 = vpop.f32.mrb[0].mxu0
        %v1749 = vadd.f32 %v1664, %v1748
        %v1750 = vpop.f32.mrb[0].mxu0
        %v1751 = vpop.f32.mrb[0].mxu0
        %v1752 = vadd.f32 %v1664, %v1751
        %v1753 = vpop.f32.mrb[0].mxu0
        %1754 = vdwg.mxu0
        %v1755 = vadd.f32 %v1525, %v1749
        %v1756 = vadd.f32 %v1526, %v1752
        %v1757 = vld [vmem:[%s824] sm:$0x1]
        %v1758 = vld [vmem:[%s827] sm:$0x1]
        %1759 = vadd.xlane.f32.xlu0 %v1755
        %v1760 = vpop.xlane.xlu0 %1759
        %1761 = vadd.xlane.f32.xlu0 %v1756
        %v1762 = vpop.xlane.xlu0 %1761
        %v1763 = vmul.f32 %v1760, 0.03125
        %v1764 = vmul.f32 %v1762, 0.03125
        %v1765 = vmul.f32 %v1755, %v1755
        %v1766 = vmul.f32 %v1756, %v1756
        %1767 = vadd.xlane.f32.xlu0 %v1765
        %v1768 = vpop.xlane.xlu0 %1767
        %1769 = vadd.xlane.f32.xlu0 %v1766
        %v1770 = vpop.xlane.xlu0 %1769
        %v1771 = vmul.f32 %v1768, 0.03125
        %v1772 = vmul.f32 %v1770, 0.03125
        %v1773 = vmul.f32 %v1763, %v1763
        %v1774 = vmul.f32 %v1764, %v1764
        %v1775 = vsub.f32 %v1771, %v1773
        %v1776 = vsub.f32 %v1772, %v1774
        %v1777 = vmax.f32 %v1775, 0.0
        %v1778 = vmax.f32 %v1776, 0.0
        %v1779 = vsub.f32 %v1755, %v1763
        %v1780 = vsub.f32 %v1756, %v1764
        %v1781 = vadd.f32 %v1777, 1e-05
        %v1782 = vadd.f32 %v1778, 1e-05
        %v1783 = vrsqrt.pop %v1781
        %v1784 = vrsqrt.pop %v1782
        %v1785 = vmul.f32 %v1779, %v1783
        %v1786 = vmul.f32 %v1780, %v1784
        %v1788 = vlaneseq
        %v1789 = vshrl.u32 %v1788, 7
        %v1790 = vsub.s32 0, %v1789
        %v1791 = vrot.slane %v1757, %v1790
        %v1793 = vmul.f32 %v1785, %v1791
        %v1794 = vmul.f32 %v1786, %v1791
        %v1796 = vlaneseq
        %v1797 = vshrl.u32 %v1796, 7
        %v1798 = vsub.s32 0, %v1797
        %v1799 = vrot.slane %v1758, %v1798
        %v1801 = vadd.f32 %v1793, %v1799
        %v1802 = vadd.f32 %v1794, %v1799
        %1803 = vst [vmem:[#allocation2] sm:$0xff] %v1801
        %1804 = vst [vmem:[#allocation2 + $0x8] sm:$0xff] %v1802
        %p1805 = scmp.eq.s32.totalorder %s45, 3
        // Predicated region
        $region117: #{trans_encoder_forward.1} parent=79 // pred_check
          %p1806 = pneg %p1805
        $region118: #{trans_encoder_forward.1} parent=79 // pred_check_branch
          %1808 = sbr.rel (%p1806) target = $region120
        $region119: #{trans_encoder_forward.1} parent=79 // pred_region
          %v1810 = vcombine.high %v1801, %v1801
          %v1812 = vunpack.c.l.s4 1966171168
          %v1813 = vunpack.c.0.s8 %v1812
          %v1814 = vlaneseq
          %v1815 = vshrl.u32 %v1814, 7
          %v1816 = vsub.s32 %v1813, %v1815
          %v1817 = vrot.slane %v1801, %v1816
          %v1819 = vunpack.c.l.s4 1966171168
          %v1820 = vunpack.c.0.s8 %v1819
          %v1821 = vlaneseq
          %v1822 = vshrl.u32 %v1821, 7
          %v1823 = vsub.s32 %v1820, %v1822
          %v1824 = vrot.slane %v1810, %v1823
          %v1825 = vcombine.high %v1817, %v1817
          %v1826 = vcombine.high %v1824, %v1824
          %v1828 = vunpack.c.l.s4 1966171168
          %v1829 = vunpack.c.0.s8 %v1828
          %v1830 = vlaneseq
          %v1831 = vshrl.u32 %v1830, 7
          %v1832 = vsub.s32 %v1829, %v1831
          %v1833 = vrot.slane %v1817, %v1832
          %v1835 = vunpack.c.l.s4 1966171168
          %v1836 = vunpack.c.0.s8 %v1835
          %v1837 = vlaneseq
          %v1838 = vshrl.u32 %v1837, 7
          %v1839 = vsub.s32 %v1836, %v1838
          %v1840 = vrot.slane %v1824, %v1839
          %v1842 = vunpack.c.l.s4 1966171168
          %v1843 = vunpack.c.0.s8 %v1842
          %v1844 = vlaneseq
          %v1845 = vshrl.u32 %v1844, 7
          %v1846 = vsub.s32 %v1843, %v1845
          %v1847 = vrot.slane %v1825, %v1846
          %v1849 = vunpack.c.l.s4 1966171168
          %v1850 = vunpack.c.0.s8 %v1849
          %v1851 = vlaneseq
          %v1852 = vshrl.u32 %v1851, 7
          %v1853 = vsub.s32 %v1850, %v1852
          %v1854 = vrot.slane %v1826, %v1853
          %v1855 = vcombine.high %v1833, %v1833
          %v1856 = vcombine.high %v1840, %v1840
          %v1857 = vcombine.high %v1847, %v1847
          %v1858 = vcombine.high %v1854, %v1854
          %1867 = vst [vmem:[#allocation17] sm:$0x1] %v1833
          %1868 = vst [vmem:[#allocation17 + $0x2] sm:$0x1] %v1847
          %1869 = vst [vmem:[#allocation17 + $0x4] sm:$0x1] %v1855
          %1870 = vst [vmem:[#allocation17 + $0x6] sm:$0x1] %v1857
          %1871 = vst [vmem:[#allocation17 + $0x8] sm:$0x1] %v1840
          %1872 = vst [vmem:[#allocation17 + $0xa] sm:$0x1] %v1854
          %1873 = vst [vmem:[#allocation17 + $0xc] sm:$0x1] %v1856
          %1874 = vst [vmem:[#allocation17 + $0xe] sm:$0x1] %v1858
          %v1876 = vcombine.high %v1802, %v1802
          %v1878 = vunpack.c.l.s4 1966171168
          %v1879 = vunpack.c.0.s8 %v1878
          %v1880 = vlaneseq
          %v1881 = vshrl.u32 %v1880, 7
          %v1882 = vsub.s32 %v1879, %v1881
          %v1883 = vrot.slane %v1802, %v1882
          %v1885 = vunpack.c.l.s4 1966171168
          %v1886 = vunpack.c.0.s8 %v1885
          %v1887 = vlaneseq
          %v1888 = vshrl.u32 %v1887, 7
          %v1889 = vsub.s32 %v1886, %v1888
          %v1890 = vrot.slane %v1876, %v1889
          %v1891 = vcombine.high %v1883, %v1883
          %v1892 = vcombine.high %v1890, %v1890
          %v1894 = vunpack.c.l.s4 1966171168
          %v1895 = vunpack.c.0.s8 %v1894
          %v1896 = vlaneseq
          %v1897 = vshrl.u32 %v1896, 7
          %v1898 = vsub.s32 %v1895, %v1897
          %v1899 = vrot.slane %v1883, %v1898
          %v1901 = vunpack.c.l.s4 1966171168
          %v1902 = vunpack.c.0.s8 %v1901
          %v1903 = vlaneseq
          %v1904 = vshrl.u32 %v1903, 7
          %v1905 = vsub.s32 %v1902, %v1904
          %v1906 = vrot.slane %v1890, %v1905
          %v1908 = vunpack.c.l.s4 1966171168
          %v1909 = vunpack.c.0.s8 %v1908
          %v1910 = vlaneseq
          %v1911 = vshrl.u32 %v1910, 7
          %v1912 = vsub.s32 %v1909, %v1911
          %v1913 = vrot.slane %v1891, %v1912
          %v1915 = vunpack.c.l.s4 1966171168
          %v1916 = vunpack.c.0.s8 %v1915
          %v1917 = vlaneseq
          %v1918 = vshrl.u32 %v1917, 7
          %v1919 = vsub.s32 %v1916, %v1918
          %v1920 = vrot.slane %v1892, %v1919
          %v1921 = vcombine.high %v1899, %v1899
          %v1922 = vcombine.high %v1906, %v1906
          %v1923 = vcombine.high %v1913, %v1913
          %v1924 = vcombine.high %v1920, %v1920
          %1933 = vst [vmem:[#allocation17 + $0x1] sm:$0x1] %v1899
          %1934 = vst [vmem:[#allocation17 + $0x3] sm:$0x1] %v1913
          %1935 = vst [vmem:[#allocation17 + $0x5] sm:$0x1] %v1921
          %1936 = vst [vmem:[#allocation17 + $0x7] sm:$0x1] %v1923
          %1937 = vst [vmem:[#allocation17 + $0x9] sm:$0x1] %v1906
          %1938 = vst [vmem:[#allocation17 + $0xb] sm:$0x1] %v1920
          %1939 = vst [vmem:[#allocation17 + $0xd] sm:$0x1] %v1922
          %1940 = vst [vmem:[#allocation17 + $0xf] sm:$0x1] %v1924
        $region120: #{trans_encoder_forward.1} parent=79 // pred_fallthru
          _
        // Predicated region
        $region121: #{trans_encoder_forward.1} parent=79 // pred_check
          %p1941 = pneg %p450
        $region122: #{trans_encoder_forward.1} parent=79 // pred_check_branch
          %1943 = sbr.rel (%p1941) target = $region124
        $region123: #{trans_encoder_forward.1} parent=79 // pred_region
          %s1945 = ssub.s32 256, 256
          %1946 = vsyncadd [#allocation5], %s1945
          %s1947 = smul.addr %s44, 32
          %s1948 = scalar_lea.hbm %s15, %s1947
          %s1949 = sshll.u32 [#allocation17], 4
          %s1950 = int_to_ptr.vmem [resolvable:$true] %s1949
          %1955 = dma.vmem_to_hbm [thread:$0]  %s1950, 256, %s1948, [#allocation5], 32, 32, 2
        $region124: #{trans_encoder_forward.1} parent=79 // pred_fallthru
          _
        // Predicated region
        $region125: #{trans_encoder_forward.1} parent=79 // pred_check
          %p1956 = pneg %p450
        $region126: #{trans_encoder_forward.1} parent=79 // pred_check_branch
          %1958 = sbr.rel (%p1956) target = $region128
        $region127: #{trans_encoder_forward.1} parent=79 // pred_region
          %1959 = dma.done [#allocation5], 256
        $region128: #{trans_encoder_forward.1} parent=79 // pred_fallthru
          _
      $region80: #{trans_encoder_forward.1} parent=5 // pred_fallthru
        _
      %p1960 = scmp.le.s32.totalorder 2, %s35
      // Predicated region
      $region129: #{trans_encoder_forward.1} parent=5 // pred_check
        %p1961 = pneg %p1960
      $region130: #{trans_encoder_forward.1} parent=5 // pred_check_branch
        %1963 = sbr.rel (%p1961) target = $region132
      $region131: #{trans_encoder_forward.1} parent=5 // pred_region
        %s1964 = ssub.s32 %s35, 2
      $region132: #{trans_encoder_forward.1} parent=5 // pred_fallthru
        _
    $region6: #{trans_encoder_forward.1} parent=1 // loop_footer
      %s39 = sadd.s32 1, %s35
    $region7: #{trans_encoder_forward.1} parent=1 // loop_footer_branch
      %34 = sbr.rel target = $region3
    $region8: #{trans_encoder_forward.1} parent=1 // loop_exit
      _
    %1965 = vsyncpa [#allocation4], 1
    %s1966 = scalar_lea.sflag [#allocation4], 1
    %1967 = vsyncpa %s1966, 1
    %1968 = vsyncpa [#allocation7], 1
    %s1969 = scalar_lea.sflag [#allocation7], 1
    %1970 = vsyncpa %s1969, 1
    %1971 = vsyncpa [#allocation10], 1
    %s1972 = scalar_lea.sflag [#allocation10], 1
    %1973 = vsyncpa %s1972, 1
    %1974 = vsyncpa [#allocation13], 1
    %s1975 = scalar_lea.sflag [#allocation13], 1
    %1976 = vsyncpa %s1975, 1
    %1977 = vsyncpa [#allocation16], 1
    %s1978 = scalar_lea.sflag [#allocation16], 1
    %1979 = vsyncpa %s1978, 1
    %1980 = vsyncpa [#allocation5], 1
    %s1981 = scalar_lea.sflag [#allocation5], 1
    %1982 = vsyncpa %s1981, 1

</llo_original>
